<compile_context>
chip_gen: v7x
topology: tpu7x:2x2x1
jax: 0.10.0
libtpu: 0.0.40
codegen_flags: <defaults>
</compile_context>

<pallas_src>
import jax
import jax.numpy as jnp
from jax.experimental import pallas as pl
from jax.experimental.pallas import tpu as pltpu

NV = 778                  # number of MANO vertices
NJ = 16                   # number of MANO kinematic joints
NCOMPS = 45               # PCA components (use_pca=True, ncomps=45)
NPOSE = (NJ - 1) * 9      # 135 pose-blend features
NK = 10 + NPOSE           # 145 = fused [betas | pose_map] contraction depth
NC = 896                  # vertex axis padded to a lane multiple (7 * 128)
NF3 = 3 * NC              # coord-major flat layout: [x-slab | y-slab | z-slab]


def _round_up(x, m):
    return (x + m - 1) // m * m


def _cdiv(a, b):
    return (a + b - 1) // b


def _pad_last(x, n):
    pad = [(0, 0)] * (x.ndim - 1) + [(0, n - x.shape[-1])]
    return jnp.pad(x, pad)


# ---------------------------------------------------------------------------
# Fused Pallas kernel: (shape + pose) blend + linear blend skinning for one
# batch tile of TB rows (TB is a multiple of 8, or 16 for bf16 operands).
# ---------------------------------------------------------------------------
def _mano_fused_kernel(bp_ref, a12_ref, sdp_ref, vt_ref, wT_ref, out_ref):
    # bp  (TB, 145)      : [betas | pose_map], compute dtype (bf16 default)
    # a12 (1, 12*TB, 16) : row (4*c+k)*TB + b holds A[b, :, c, k], compute dtype
    # sdp (145, NF3)     : [shapedirs ; posedirs], coord-major, vertex padded to 896
    # vt  (1, NF3)       : template vertices (f32, added after f32 accumulation)
    # wT  (16, NC)       : skinning weights transposed, zero padded, compute dtype
    # out (TB, NF3)      : skinned vertices, coord-major (global trans added outside)
    TB = bp_ref.shape[0]
    f32 = jnp.float32

    # fused shape-blend + pose-blend: a single K=145 MXU contraction, f32 acc
    v_posed = jnp.dot(bp_ref[...], sdp_ref[...],
                      preferred_element_type=f32) + vt_ref[...]          # (TB, NF3)

    X = v_posed[:, 0 * NC:1 * NC]                                        # (TB, NC)
    Y = v_posed[:, 1 * NC:2 * NC]
    Z = v_posed[:, 2 * NC:3 * NC]

    a12 = a12_ref[0]                                                     # (12*TB, 16)
    wT = wT_ref[...]                                                     # (16, NC)

    for c in range(3):
        # blended per-vertex transform row c: all four columns in one dot (M=4*TB)
        bl = jnp.dot(a12[4 * c * TB:4 * (c + 1) * TB, :], wT,
                     preferred_element_type=f32)                         # (4*TB, NC)
        out_c = bl[3 * TB:4 * TB, :]                                     # translation
        out_c = out_c + bl[0 * TB:1 * TB, :] * X
        out_c = out_c + bl[1 * TB:2 * TB, :] * Y
        out_c = out_c + bl[2 * TB:3 * TB, :] * Z
        out_ref[:, c * NC:(c + 1) * NC] = out_c


def mano_blend_skin(bp, A3x4, sdp, vt, wT):
    """Runs the fused kernel. Returns skinned vertices (B, 778, 3), no global trans."""
    B = bp.shape[0]
    cd = sdp.dtype
    mult = 16 if cd == jnp.bfloat16 else 8
    # Aim for >= 2 batch tiles when B allows it: gives v7x's 2nd TensorCore work
    # via the "parallel" axis (no effect on v5e/v6e). TB caps at 256 to fill the
    # 256-row MXU on v6e/v7x (v5e's 128-row MXU simply runs two passes).
    tiles = 2 if B > mult else 1
    TB = min(256, _round_up(_cdiv(B, tiles), mult))
    B_pad = _round_up(B, TB)
    GB = B_pad // TB

    bp_p = jnp.pad(bp, ((0, B_pad - B), (0, 0))).astype(cd)

    # Group the per-joint 3x4 skinning transforms by (row c, column k), batch-minor,
    # so every (TB, 16) slab the kernel slices sits at a sublane offset multiple of TB.
    R = jnp.transpose(A3x4, (2, 3, 0, 1)).reshape(12, B, NJ)              # [c*4+k, b, j]
    R = jnp.pad(R, ((0, 0), (0, B_pad - B), (0, 0)))
    a12 = jnp.transpose(R.reshape(12, GB, TB, NJ), (1, 0, 2, 3)).reshape(GB, 12 * TB, NJ)
    a12 = a12.astype(cd)
    # TODO(synk): a12's last dim (16) is lane-sparse (pads to 128 lanes in VMEM);
    # lane-packing it is a minor cleanup (~100 KiB of real data) and is skipped.

    out = pl.pallas_call(
        _mano_fused_kernel,
        out_shape=jax.ShapeDtypeStruct((B_pad, NF3), jnp.float32),
        grid_spec=pltpu.PrefetchScalarGridSpec(
            num_scalar_prefetch=0, grid=(GB,),
            in_specs=[
                pl.BlockSpec((TB, NK), lambda i: (i, 0)),
                pl.BlockSpec((1, 12 * TB, NJ), lambda i: (i, 0, 0)),
                pl.BlockSpec((NK, NF3), lambda i: (0, 0)),       # grid-invariant
                pl.BlockSpec((1, NF3), lambda i: (0, 0)),        # grid-invariant
                pl.BlockSpec((NJ, NC), lambda i: (0, 0)),        # grid-invariant
            ],
            out_specs=pl.BlockSpec((TB, NF3), lambda i: (i, 0))),
        compiler_params=pltpu.CompilerParams(dimension_semantics=("parallel",)),
    )(bp_p, a12, sdp, vt, wT)

    verts_cm = out.reshape(B_pad, 3, NC)[:B, :, :NV]                      # (B, 3, 778)
    return jnp.transpose(verts_cm, (0, 2, 1))                             # (B, 778, 3)


# ---------------------------------------------------------------------------
# Small-matrix JAX glue (axis-angle path of manopth, tiny 4x4 algebra)
# ---------------------------------------------------------------------------
def quat2mat(quat):
    nq = quat / jnp.linalg.norm(quat, axis=1, keepdims=True)
    w, x, y, z = nq[:, 0], nq[:, 1], nq[:, 2], nq[:, 3]
    w2, x2, y2, z2 = w * w, x * x, y * y, z * z
    wx, wy, wz = w * x, w * y, w * z
    xy, xz, yz = x * y, x * z, y * z
    rot = jnp.stack([w2 + x2 - y2 - z2, 2 * xy - 2 * wz, 2 * wy + 2 * xz,
                     2 * wz + 2 * xy, w2 - x2 + y2 - z2, 2 * yz - 2 * wx,
                     2 * xz - 2 * wy, 2 * wx + 2 * yz, w2 - x2 - y2 + z2], axis=1)
    return rot.reshape(-1, 3, 3)


def batch_rodrigues(axisang):                       # (N, 3) -> (N, 3, 3)
    angle = jnp.linalg.norm(axisang + 1e-8, axis=1, keepdims=True)
    axis = axisang / angle
    half = angle * 0.5
    quat = jnp.concatenate([jnp.cos(half), jnp.sin(half) * axis], axis=1)
    return quat2mat(quat)


def with_zeros(x):                                  # (..., 3, 4) -> (..., 4, 4)
    pad = jnp.broadcast_to(jnp.array([0., 0., 0., 1.], x.dtype), x.shape[:-2] + (1, 4))
    return jnp.concatenate([x, pad], axis=-2)


# ---------------------------------------------------------------------------
# The module
# ---------------------------------------------------------------------------
class YcbMANOLayerPallas:
    """Pallas port of ycb_MANOLayer (manopth ManoLayer, right/left, use_pca=True,
    ncomps=45, flat_hand_mean=False), with synthetic deterministic MANO params."""

    def __init__(self, side, betas, key=jax.random.PRNGKey(42),
                 compute_dtype=jnp.bfloat16):
        assert side in ('right', 'left')
        self._side = side
        ks = jax.random.split(key, 8)
        self.shapedirs = 0.01 * jax.random.normal(ks[0], (NV, 3, 10), jnp.float32)
        self.posedirs = 0.001 * jax.random.normal(ks[1], (NV, 3, NPOSE), jnp.float32)
        self.v_template = 0.1 * jax.random.normal(ks[2], (NV, 3), jnp.float32)
        self.J_regressor = jax.nn.softmax(jax.random.normal(ks[3], (NJ, NV), jnp.float32), axis=1)
        self.weights = jax.nn.softmax(2.0 * jax.random.normal(ks[4], (NV, NJ), jnp.float32), axis=1)
        self.selected_comps = 0.1 * jax.random.normal(ks[5], (NCOMPS, NCOMPS), jnp.float32)
        self.hands_mean = 0.1 * jax.random.normal(ks[6], (NCOMPS,), jnp.float32)
        self.faces = jax.random.randint(ks[7], (1538, 3), 0, NV)         # buffer 'f' (unused)
        self.b = jnp.asarray(betas, jnp.float32).reshape(1, 10)          # buffer 'b'
        # buffer 'root_trans' (computed exactly as in __init__, unused in forward)
        v0 = jnp.einsum('vis,s->vi', self.shapedirs, self.b[0]) + self.v_template
        self.root_trans = (self.J_regressor[0] @ v0).reshape(1, 3)

        # --- pre-arranged coord-major, lane-padded kernel operands ---
        # bf16 operands by default (MXU throughput + halved invariant DMA stream);
        # pass compute_dtype=jnp.float32 for reference numerics.
        cd = compute_dtype
        sd = _pad_last(jnp.transpose(self.shapedirs, (2, 1, 0)), NC).reshape(10, NF3)
        pd = _pad_last(jnp.transpose(self.posedirs, (2, 1, 0)), NC).reshape(NPOSE, NF3)
        self._sdp = jnp.concatenate([sd, pd], axis=0).astype(cd)          # (145, NF3)
        self._vt = _pad_last(self.v_template.T, NC).reshape(1, NF3)       # f32
        self._wT = _pad_last(self.weights.T, NC).astype(cd)               # (16, 896)
        # joint regression is linear in beta: fold the big regressor out of the kernel
        self._J_sd = jnp.einsum('kv,vis->ski', self.J_regressor, self.shapedirs)  # (10,16,3)
        self._J_vt = self.J_regressor @ self.v_template                           # (16,3)

        self._tips = jnp.array([745, 317, 444, 556, 673] if side == 'right'
                               else [745, 317, 445, 556, 673])
        self._joint_order = jnp.array(
            [0, 13, 14, 15, 16, 1, 2, 3, 17, 4, 5, 6, 18, 10, 11, 12, 19, 7, 8, 9, 20])

    def __call__(self, p, t):
        B = p.shape[0]
        p = p.astype(jnp.float32)
        t = t.astype(jnp.float32)
        betas = jnp.broadcast_to(self.b, (B, 10))

        # PCA pose -> full axis-angle pose (flat_hand_mean=False adds hands_mean)
        root_pose = p[:, :3]
        full_hand_pose = p[:, 3:3 + NCOMPS] @ self.selected_comps
        full_pose = jnp.concatenate([root_pose, self.hands_mean[None] + full_hand_pose], axis=1)
        rot_mats = batch_rodrigues(full_pose.reshape(-1, 3)).reshape(B, NJ, 3, 3)
        pose_map = (rot_mats[:, 1:] - jnp.eye(3, dtype=jnp.float32)).reshape(B, NPOSE)

        # joint regression (folded out of the kernel; tiny matmul)
        th_j = jnp.einsum('bs,ski->bki', betas, self._J_sd) + self._J_vt[None]   # (B,16,3)

        # --- kinematic chain (tiny 4x4 algebra, plain JAX glue) ---
        root_rot = rot_mats[:, 0]
        root_j = th_j[:, 0]
        root_tf = with_zeros(jnp.concatenate([root_rot, root_j[:, :, None]], axis=2))  # (B,4,4)
        all_rots = rot_mats[:, 1:]
        lev1, lev2, lev3 = [1, 4, 7, 10, 13], [2, 5, 8, 11, 14], [3, 6, 9, 12, 15]
        lev1_j, lev2_j, lev3_j = th_j[:, lev1], th_j[:, lev2], th_j[:, lev3]

        def rel_tf(rots, j_child, j_parent):
            return with_zeros(jnp.concatenate([rots, (j_child - j_parent)[..., None]], axis=3))

        lev1_flt = jnp.matmul(root_tf[:, None],
                              rel_tf(all_rots[:, [i - 1 for i in lev1]], lev1_j, root_j[:, None]))
        lev2_flt = jnp.matmul(lev1_flt,
                              rel_tf(all_rots[:, [i - 1 for i in lev2]], lev2_j, lev1_j))
        lev3_flt = jnp.matmul(lev2_flt,
                              rel_tf(all_rots[:, [i - 1 for i in lev3]], lev3_j, lev2_j))
        reorder = jnp.array([0, 1, 6, 11, 2, 7, 12, 3, 8, 13, 4, 9, 14, 5, 10, 15])
        th_results = jnp.concatenate([root_tf[:, None], lev1_flt, lev2_flt, lev3_flt],
                                     axis=1)[:, reorder]                                # (B,16,4,4)

        # remove rest-pose joint locations from translations -> skinning transforms
        joint_js = jnp.concatenate([th_j, jnp.zeros((B, NJ, 1), jnp.float32)], axis=2)   # (B,16,4)
        tmp2 = jnp.matmul(th_results, joint_js[..., None])                               # (B,16,4,1)
        A = th_results - jnp.pad(tmp2, ((0, 0), (0, 0), (0, 0), (3, 0)))
        A3x4 = A[:, :, :3, :]                                                            # (B,16,3,4)

        # --- fused Pallas kernel: K=145 blend-shape matmul + LBS skinning ---
        bp = jnp.concatenate([betas, pose_map], axis=1)                                  # (B,145)
        verts = mano_blend_skin(bp, A3x4, self._sdp, self._vt, self._wT) + t[:, None, :]

        jtr = th_results[:, :, :3, 3] + t[:, None, :]                                    # (B,16,3)
        tips = verts[:, self._tips]                                                      # (B,5,3)
        joints = jnp.concatenate([jtr, tips], axis=1)[:, self._joint_order]              # (B,21,3)
        return verts, joints


if __name__ == "__main__":
    key = jax.random.PRNGKey(0)
    kb, kp, kt = jax.random.split(key, 3)
    betas = jax.random.normal(kb, (10,), jnp.float32)
    layer = YcbMANOLayerPallas('right', betas)

    B = 2
    p = 0.1 * jax.random.normal(kp, (B, 48), jnp.float32)   # pose
    t = 0.05 * jax.random.normal(kt, (B, 3), jnp.float32)   # trans

    v, j = layer(p, t)
    jax.block_until_ready((v, j))
    assert v.shape == (B, 778, 3) and v.dtype == jnp.float32
    assert j.shape == (B, 21, 3) and j.dtype == jnp.float32
    print("KERNEL_OK")
</pallas_src>

<mosaic_0001>
module attributes {stable_mosaic.version = 11 : i64} {
  func.func @_mano_fused_kernel(%arg0: i32, %arg1: memref<16x145xbf16, #tpu.memory_space<vmem>>, %arg2: memref<1x192x16xbf16, #tpu.memory_space<vmem>>, %arg3: memref<145x2688xbf16, #tpu.memory_space<vmem>>, %arg4: memref<1x2688xf32, #tpu.memory_space<vmem>>, %arg5: memref<16x896xbf16, #tpu.memory_space<vmem>>, %arg6: memref<16x2688xf32, #tpu.memory_space<vmem>>) attributes {dimension_semantics = [#tpu.dimension_semantics<parallel>], iteration_bounds = array<i64: 1>, scalar_prefetch = 0 : i64, scratch_operands = 0 : i64, tpu.core_type = #tpu.core_type<tc>, window_params = [{transform_indices = @transform_0, window_bounds = array<i64: 16, 145>}, {transform_indices = @transform_1, window_bounds = array<i64: 1, 192, 16>}, {pipeline_mode = #tpu.pipeline_mode<synchronous>, transform_indices = @transform_2, window_bounds = array<i64: 145, 2688>}, {pipeline_mode = #tpu.pipeline_mode<synchronous>, transform_indices = @transform_3, window_bounds = array<i64: 1, 2688>}, {pipeline_mode = #tpu.pipeline_mode<synchronous>, transform_indices = @transform_4, window_bounds = array<i64: 16, 896>}, {transform_indices = @transform_5, window_bounds = array<i64: 16, 2688>}]} {
    %c0 = arith.constant 0 : index
    %c0_0 = arith.constant 0 : index
    %0 = vector.load %arg1[%c0, %c0_0] : memref<16x145xbf16, #tpu.memory_space<vmem>>, vector<16x145xbf16>
    %c0_1 = arith.constant 0 : index
    %c0_2 = arith.constant 0 : index
    %1 = vector.load %arg3[%c0_1, %c0_2] : memref<145x2688xbf16, #tpu.memory_space<vmem>>, vector<145x2688xbf16>
    %cst = arith.constant dense<0.000000e+00> : vector<16x2688xf32>
    %2 = tpu.matmul %0, %1, %cst {dimension_numbers = #tpu.dot_dimension_numbers<[1], [0], [0], [1], [0, 0, 1, 1], [], []>} : vector<16x145xbf16>, vector<145x2688xbf16>, vector<16x2688xf32> -> vector<16x2688xf32>
    %c0_3 = arith.constant 0 : index
    %c0_4 = arith.constant 0 : index
    %3 = vector.load %arg4[%c0_3, %c0_4] : memref<1x2688xf32, #tpu.memory_space<vmem>>, vector<1x2688xf32>
    %4 = vector.broadcast %3 : vector<1x2688xf32> to vector<16x2688xf32>
    %5 = arith.addf %2, %4 : vector<16x2688xf32>
    %6 = vector.extract_strided_slice %5 {offsets = [0, 0], sizes = [16, 896], strides = [1, 1]} : vector<16x2688xf32> to vector<16x896xf32>
    %7 = vector.extract_strided_slice %5 {offsets = [0, 896], sizes = [16, 896], strides = [1, 1]} : vector<16x2688xf32> to vector<16x896xf32>
    %8 = vector.extract_strided_slice %5 {offsets = [0, 1792], sizes = [16, 896], strides = [1, 1]} : vector<16x2688xf32> to vector<16x896xf32>
    %c0_5 = arith.constant 0 : index
    %c0_6 = arith.constant 0 : index
    %c0_7 = arith.constant 0 : index
    %9 = vector.load %arg2[%c0_5, %c0_6, %c0_7] : memref<1x192x16xbf16, #tpu.memory_space<vmem>>, vector<1x192x16xbf16>
    %10 = vector.shape_cast %9 : vector<1x192x16xbf16> to vector<192x16xbf16>
    %c0_8 = arith.constant 0 : index
    %c0_9 = arith.constant 0 : index
    %11 = vector.load %arg5[%c0_8, %c0_9] : memref<16x896xbf16, #tpu.memory_space<vmem>>, vector<16x896xbf16>
    %12 = vector.extract_strided_slice %10 {offsets = [0, 0], sizes = [64, 16], strides = [1, 1]} : vector<192x16xbf16> to vector<64x16xbf16>
    %cst_10 = arith.constant dense<0.000000e+00> : vector<64x896xf32>
    %13 = tpu.matmul %12, %11, %cst_10 {dimension_numbers = #tpu.dot_dimension_numbers<[1], [0], [0], [1], [0, 0, 1, 1], [], []>} : vector<64x16xbf16>, vector<16x896xbf16>, vector<64x896xf32> -> vector<64x896xf32>
    %14 = vector.extract_strided_slice %13 {offsets = [48, 0], sizes = [16, 896], strides = [1, 1]} : vector<64x896xf32> to vector<16x896xf32>
    %15 = vector.extract_strided_slice %13 {offsets = [0, 0], sizes = [16, 896], strides = [1, 1]} : vector<64x896xf32> to vector<16x896xf32>
    %16 = arith.mulf %15, %6 : vector<16x896xf32>
    %17 = arith.addf %14, %16 : vector<16x896xf32>
    %18 = vector.extract_strided_slice %13 {offsets = [16, 0], sizes = [16, 896], strides = [1, 1]} : vector<64x896xf32> to vector<16x896xf32>
    %19 = arith.mulf %18, %7 : vector<16x896xf32>
    %20 = arith.addf %17, %19 : vector<16x896xf32>
    %21 = vector.extract_strided_slice %13 {offsets = [32, 0], sizes = [16, 896], strides = [1, 1]} : vector<64x896xf32> to vector<16x896xf32>
    %22 = arith.mulf %21, %8 : vector<16x896xf32>
    %23 = arith.addf %20, %22 : vector<16x896xf32>
    %c0_11 = arith.constant 0 : index
    %c0_12 = arith.constant 0 : index
    %24 = vector.load %arg6[%c0_11, %c0_12] : memref<16x2688xf32, #tpu.memory_space<vmem>>, vector<16x896xf32>
    tpu.vector_store %arg6[%c0_11, %c0_12], %23 {strides = array<i32>} : memref<16x2688xf32, #tpu.memory_space<vmem>>, vector<16x896xf32>,
    %25 = vector.extract_strided_slice %10 {offsets = [64, 0], sizes = [64, 16], strides = [1, 1]} : vector<192x16xbf16> to vector<64x16xbf16>
    %cst_13 = arith.constant dense<0.000000e+00> : vector<64x896xf32>
    %26 = tpu.matmul %25, %11, %cst_13 {dimension_numbers = #tpu.dot_dimension_numbers<[1], [0], [0], [1], [0, 0, 1, 1], [], []>} : vector<64x16xbf16>, vector<16x896xbf16>, vector<64x896xf32> -> vector<64x896xf32>
    %27 = vector.extract_strided_slice %26 {offsets = [48, 0], sizes = [16, 896], strides = [1, 1]} : vector<64x896xf32> to vector<16x896xf32>
    %28 = vector.extract_strided_slice %26 {offsets = [0, 0], sizes = [16, 896], strides = [1, 1]} : vector<64x896xf32> to vector<16x896xf32>
    %29 = arith.mulf %28, %6 : vector<16x896xf32>
    %30 = arith.addf %27, %29 : vector<16x896xf32>
    %31 = vector.extract_strided_slice %26 {offsets = [16, 0], sizes = [16, 896], strides = [1, 1]} : vector<64x896xf32> to vector<16x896xf32>
    %32 = arith.mulf %31, %7 : vector<16x896xf32>
    %33 = arith.addf %30, %32 : vector<16x896xf32>
    %34 = vector.extract_strided_slice %26 {offsets = [32, 0], sizes = [16, 896], strides = [1, 1]} : vector<64x896xf32> to vector<16x896xf32>
    %35 = arith.mulf %34, %8 : vector<16x896xf32>
    %36 = arith.addf %33, %35 : vector<16x896xf32>
    %c0_14 = arith.constant 0 : index
    %c896 = arith.constant 896 : index
    %37 = vector.load %arg6[%c0_14, %c896] : memref<16x2688xf32, #tpu.memory_space<vmem>>, vector<16x896xf32>
    tpu.vector_store %arg6[%c0_14, %c896], %36 {strides = array<i32>} : memref<16x2688xf32, #tpu.memory_space<vmem>>, vector<16x896xf32>,
    %38 = vector.extract_strided_slice %10 {offsets = [128, 0], sizes = [64, 16], strides = [1, 1]} : vector<192x16xbf16> to vector<64x16xbf16>
    %cst_15 = arith.constant dense<0.000000e+00> : vector<64x896xf32>
    %39 = tpu.matmul %38, %11, %cst_15 {dimension_numbers = #tpu.dot_dimension_numbers<[1], [0], [0], [1], [0, 0, 1, 1], [], []>} : vector<64x16xbf16>, vector<16x896xbf16>, vector<64x896xf32> -> vector<64x896xf32>
    %40 = vector.extract_strided_slice %39 {offsets = [48, 0], sizes = [16, 896], strides = [1, 1]} : vector<64x896xf32> to vector<16x896xf32>
    %41 = vector.extract_strided_slice %39 {offsets = [0, 0], sizes = [16, 896], strides = [1, 1]} : vector<64x896xf32> to vector<16x896xf32>
    %42 = arith.mulf %41, %6 : vector<16x896xf32>
    %43 = arith.addf %40, %42 : vector<16x896xf32>
    %44 = vector.extract_strided_slice %39 {offsets = [16, 0], sizes = [16, 896], strides = [1, 1]} : vector<64x896xf32> to vector<16x896xf32>
    %45 = arith.mulf %44, %7 : vector<16x896xf32>
    %46 = arith.addf %43, %45 : vector<16x896xf32>
    %47 = vector.extract_strided_slice %39 {offsets = [32, 0], sizes = [16, 896], strides = [1, 1]} : vector<64x896xf32> to vector<16x896xf32>
    %48 = arith.mulf %47, %8 : vector<16x896xf32>
    %49 = arith.addf %46, %48 : vector<16x896xf32>
    %c0_16 = arith.constant 0 : index
    %c1792 = arith.constant 1792 : index
    %50 = vector.load %arg6[%c0_16, %c1792] : memref<16x2688xf32, #tpu.memory_space<vmem>>, vector<16x896xf32>
    tpu.vector_store %arg6[%c0_16, %c1792], %49 {strides = array<i32>} : memref<16x2688xf32, #tpu.memory_space<vmem>>, vector<16x896xf32>,
    return
  }
  func.func @transform_0(%arg0: i32) -> (i32, i32) {
    %c0_i32 = arith.constant 0 : i32
    %c0_i32_0 = arith.constant 0 : i32
    return %arg0, %c0_i32 : i32, i32
  }
  func.func @transform_1(%arg0: i32) -> (i32, i32, i32) {
    %c0_i32 = arith.constant 0 : i32
    %c0_i32_0 = arith.constant 0 : i32
    %c0_i32_1 = arith.constant 0 : i32
    return %arg0, %c0_i32, %c0_i32_0 : i32, i32, i32
  }
  func.func @transform_2(%arg0: i32) -> (i32, i32) {
    %c0_i32 = arith.constant 0 : i32
    %c0_i32_0 = arith.constant 0 : i32
    %c0_i32_1 = arith.constant 0 : i32
    return %c0_i32, %c0_i32_0 : i32, i32
  }
  func.func @transform_3(%arg0: i32) -> (i32, i32) {
    %c0_i32 = arith.constant 0 : i32
    %c0_i32_0 = arith.constant 0 : i32
    %c0_i32_1 = arith.constant 0 : i32
    return %c0_i32, %c0_i32_0 : i32, i32
  }
  func.func @transform_4(%arg0: i32) -> (i32, i32) {
    %c0_i32 = arith.constant 0 : i32
    %c0_i32_0 = arith.constant 0 : i32
    %c0_i32_1 = arith.constant 0 : i32
    return %c0_i32, %c0_i32_0 : i32, i32
  }
  func.func @transform_5(%arg0: i32) -> (i32, i32) {
    %c0_i32 = arith.constant 0 : i32
    %c0_i32_0 = arith.constant 0 : i32
    return %arg0, %c0_i32 : i32, i32
  }
}

</mosaic_0001>

<llo_original>
// kernel: tpu_custom_call.1
$region0: #{tpu_custom_call.1}
  #allocation0 [shape = 'u32[]', space=smem, size = 0x4, offset = 0x4, fixed_abs, tag = 'smem constant byte address 0x4 - core index']
  #allocation1 [shape = 'u32[144,128]{1,0:T(1,128)}', space=vmem, size = 0x12000, scoped, tag = 'internal scratch']
  %s0 = inlined_call_operand.vmem [shape: bf16[16,145], index: 0, kind: input, shape index: {}]
  %s1 = inlined_call_operand.vmem [shape: bf16[1,192,16], index: 1, kind: input, shape index: {}]
  %s2 = inlined_call_operand.hbm [shape: bf16[145,2688], index: 2, kind: input, shape index: {}]
  %s3 = inlined_call_operand.vmem [shape: f32[1,2688], index: 3, kind: input, shape index: {}]
  %s4 = inlined_call_operand.vmem [shape: bf16[16,896], index: 4, kind: input, shape index: {}]
  %s5 = inlined_call_operand.hbm [shape: f32[16,2688], index: 5, kind: output, shape index: {}]
  %s6 = sld [smem:[#allocation0]]
  $region34: #{tpu_custom_call.1} parent=0
    _
  %s8 = ssub.s32 1, %s6
  %s9 = scalar_select 0, %s8, %s6
  $region1: #{tpu_custom_call.1} parent=0
    #allocation2 [shape = 'u8[817152]{0}', space=vmem, size = 0xc7800, scoped, tag = 'input window, operand 2, single buffered']
    #allocation3 [shape = 's32[1]{0}', space=sflag, size = 0x4, scoped, tag = 'scoped memory for tpu_custom_call.1']
    #allocation4 [shape = 's32[1]{0}', space=sflag, size = 0x4, scoped, tag = 'scoped memory for tpu_custom_call.1']
    #allocation5 [shape = 'u8[172032]{0}', space=vmem, size = 0x2a000, scoped, tag = 'output window, operand 0, single buffered']
    %10 = vsyncpa [#allocation3], 0
    %11 = vsyncpa [#allocation4], 0
    // Predicated region
    $region2: #{tpu_custom_call.1} parent=1 // pred_check
      _
    $region3: #{tpu_custom_call.1} parent=1 // pred_check_branch
      %13 = sbr.rel (0) target = $region5
    $region4: #{tpu_custom_call.1} parent=1 // pred_region
      _
    $region5: #{tpu_custom_call.1} parent=1 // pred_fallthru
      _
    // Predicated region
    $region6: #{tpu_custom_call.1} parent=1 // pred_check
      _
    $region7: #{tpu_custom_call.1} parent=1 // pred_check_branch
      %15 = sbr.rel (0) target = $region9
    $region8: #{tpu_custom_call.1} parent=1 // pred_region
      _
    $region9: #{tpu_custom_call.1} parent=1 // pred_fallthru
      _
    // Predicated region
    $region10: #{tpu_custom_call.1} parent=1 // pred_check
      _
    $region11: #{tpu_custom_call.1} parent=1 // pred_check_branch
      %17 = sbr.rel (0) target = $region13
    $region12: #{tpu_custom_call.1} parent=1 // pred_region
      %s19 = ssub.s32 25536, 25536
      %20 = vsyncadd [#allocation3], %s19
      %s21 = sshll.u32 [#allocation2], 4
      %s22 = int_to_ptr.vmem [resolvable:$true] %s21
      %27 = dma.hbm_to_vmem [thread:$0]  %s2, 25536, %s22, [#allocation3], 1344, 1344, 84
    $region13: #{tpu_custom_call.1} parent=1 // pred_fallthru
      _
    // Predicated region
    $region14: #{tpu_custom_call.1} parent=1 // pred_check
      _
    $region15: #{tpu_custom_call.1} parent=1 // pred_check_branch
      %29 = sbr.rel (0) target = $region17
    $region16: #{tpu_custom_call.1} parent=1 // pred_region
      _
    $region17: #{tpu_custom_call.1} parent=1 // pred_fallthru
      _
    // Predicated region
    $region18: #{tpu_custom_call.1} parent=1 // pred_check
      _
    $region19: #{tpu_custom_call.1} parent=1 // pred_check_branch
      %31 = sbr.rel (0) target = $region21
    $region20: #{tpu_custom_call.1} parent=1 // pred_region
      _
    $region21: #{tpu_custom_call.1} parent=1 // pred_fallthru
      _
    // Predicated region
    $region22: #{tpu_custom_call.1} parent=1 // pred_check
      _
    $region23: #{tpu_custom_call.1} parent=1 // pred_check_branch
      %33 = sbr.rel (0) target = $region25
    $region24: #{tpu_custom_call.1} parent=1 // pred_region
      %34 = dma.done [#allocation3], 25536
    $region25: #{tpu_custom_call.1} parent=1 // pred_fallthru
      _
    %v36 = vld [vmem:[%s0] sm:$0xff]
    %v37 = vld [vmem:[%s0 + $0x8] sm:$0xff]
    %v38 = vld [vmem:[#allocation2] sm:$0xff]
    %v39 = vld [vmem:[#allocation2 + $0x8] sm:$0xff]
    %v40 = vld [vmem:[#allocation2 + $0x10] sm:$0xff]
    %v41 = vld [vmem:[#allocation2 + $0x18] sm:$0xff]
    %v42 = vld [vmem:[#allocation2 + $0x20] sm:$0xff]
    %v43 = vld [vmem:[#allocation2 + $0x28] sm:$0xff]
    %v44 = vld [vmem:[#allocation2 + $0x30] sm:$0xff]
    %v45 = vld [vmem:[#allocation2 + $0x38] sm:$0xff]
    %v46 = vld [vmem:[#allocation2 + $0x40] sm:$0xff]
    %v47 = vld [vmem:[#allocation2 + $0x48] sm:$0xff]
    %v48 = vld [vmem:[#allocation2 + $0x50] sm:$0xf]
    %v49 = vld [vmem:[#allocation2 + $0x54] sm:$0xff]
    %v50 = vld [vmem:[#allocation2 + $0x5c] sm:$0xff]
    %v51 = vld [vmem:[#allocation2 + $0x64] sm:$0xff]
    %v52 = vld [vmem:[#allocation2 + $0x6c] sm:$0xff]
    %v53 = vld [vmem:[#allocation2 + $0x74] sm:$0xff]
    %v54 = vld [vmem:[#allocation2 + $0x7c] sm:$0xff]
    %v55 = vld [vmem:[#allocation2 + $0x84] sm:$0xff]
    %v56 = vld [vmem:[#allocation2 + $0x8c] sm:$0xff]
    %v57 = vld [vmem:[#allocation2 + $0x94] sm:$0xff]
    %v58 = vld [vmem:[#allocation2 + $0x9c] sm:$0xff]
    %v59 = vld [vmem:[#allocation2 + $0xa4] sm:$0xf]
    %v60 = vld [vmem:[#allocation2 + $0xa8] sm:$0xff]
    %v61 = vld [vmem:[#allocation2 + $0xb0] sm:$0xff]
    %v62 = vld [vmem:[#allocation2 + $0xb8] sm:$0xff]
    %v63 = vld [vmem:[#allocation2 + $0xc0] sm:$0xff]
    %v64 = vld [vmem:[#allocation2 + $0xc8] sm:$0xff]
    %v65 = vld [vmem:[#allocation2 + $0xd0] sm:$0xff]
    %v66 = vld [vmem:[#allocation2 + $0xd8] sm:$0xff]
    %v67 = vld [vmem:[#allocation2 + $0xe0] sm:$0xff]
    %v68 = vld [vmem:[#allocation2 + $0xe8] sm:$0xff]
    %v69 = vld [vmem:[#allocation2 + $0xf0] sm:$0xff]
    %v70 = vld [vmem:[#allocation2 + $0xf8] sm:$0xf]
    %v71 = vld [vmem:[#allocation2 + $0xfc] sm:$0xff]
    %v72 = vld [vmem:[#allocation2 + $0x104] sm:$0xff]
    %v73 = vld [vmem:[#allocation2 + $0x10c] sm:$0xff]
    %v74 = vld [vmem:[#allocation2 + $0x114] sm:$0xff]
    %v75 = vld [vmem:[#allocation2 + $0x11c] sm:$0xff]
    %v76 = vld [vmem:[#allocation2 + $0x124] sm:$0xff]
    %v77 = vld [vmem:[#allocation2 + $0x12c] sm:$0xff]
    %v78 = vld [vmem:[#allocation2 + $0x134] sm:$0xff]
    %v79 = vld [vmem:[#allocation2 + $0x13c] sm:$0xff]
    %v80 = vld [vmem:[#allocation2 + $0x144] sm:$0xff]
    %v81 = vld [vmem:[#allocation2 + $0x14c] sm:$0xf]
    %v82 = vld [vmem:[#allocation2 + $0x150] sm:$0xff]
    %v83 = vld [vmem:[#allocation2 + $0x158] sm:$0xff]
    %v84 = vld [vmem:[#allocation2 + $0x160] sm:$0xff]
    %v85 = vld [vmem:[#allocation2 + $0x168] sm:$0xff]
    %v86 = vld [vmem:[#allocation2 + $0x170] sm:$0xff]
    %v87 = vld [vmem:[#allocation2 + $0x178] sm:$0xff]
    %v88 = vld [vmem:[#allocation2 + $0x180] sm:$0xff]
    %v89 = vld [vmem:[#allocation2 + $0x188] sm:$0xff]
    %v90 = vld [vmem:[#allocation2 + $0x190] sm:$0xff]
    %v91 = vld [vmem:[#allocation2 + $0x198] sm:$0xff]
    %v92 = vld [vmem:[#allocation2 + $0x1a0] sm:$0xf]
    %v93 = vld [vmem:[#allocation2 + $0x1a4] sm:$0xff]
    %v94 = vld [vmem:[#allocation2 + $0x1ac] sm:$0xff]
    %v95 = vld [vmem:[#allocation2 + $0x1b4] sm:$0xff]
    %v96 = vld [vmem:[#allocation2 + $0x1bc] sm:$0xff]
    %v97 = vld [vmem:[#allocation2 + $0x1c4] sm:$0xff]
    %v98 = vld [vmem:[#allocation2 + $0x1cc] sm:$0xff]
    %v99 = vld [vmem:[#allocation2 + $0x1d4] sm:$0xff]
    %v100 = vld [vmem:[#allocation2 + $0x1dc] sm:$0xff]
    %v101 = vld [vmem:[#allocation2 + $0x1e4] sm:$0xff]
    %v102 = vld [vmem:[#allocation2 + $0x1ec] sm:$0xff]
    %v103 = vld [vmem:[#allocation2 + $0x1f4] sm:$0xf]
    %v104 = vld [vmem:[#allocation2 + $0x1f8] sm:$0xff]
    %v105 = vld [vmem:[#allocation2 + $0x200] sm:$0xff]
    %v106 = vld [vmem:[#allocation2 + $0x208] sm:$0xff]
    %v107 = vld [vmem:[#allocation2 + $0x210] sm:$0xff]
    %v108 = vld [vmem:[#allocation2 + $0x218] sm:$0xff]
    %v109 = vld [vmem:[#allocation2 + $0x220] sm:$0xff]
    %v110 = vld [vmem:[#allocation2 + $0x228] sm:$0xff]
    %v111 = vld [vmem:[#allocation2 + $0x230] sm:$0xff]
    %v112 = vld [vmem:[#allocation2 + $0x238] sm:$0xff]
    %v113 = vld [vmem:[#allocation2 + $0x240] sm:$0xff]
    %v114 = vld [vmem:[#allocation2 + $0x248] sm:$0xf]
    %v115 = vld [vmem:[#allocation2 + $0x24c] sm:$0xff]
    %v116 = vld [vmem:[#allocation2 + $0x254] sm:$0xff]
    %v117 = vld [vmem:[#allocation2 + $0x25c] sm:$0xff]
    %v118 = vld [vmem:[#allocation2 + $0x264] sm:$0xff]
    %v119 = vld [vmem:[#allocation2 + $0x26c] sm:$0xff]
    %v120 = vld [vmem:[#allocation2 + $0x274] sm:$0xff]
    %v121 = vld [vmem:[#allocation2 + $0x27c] sm:$0xff]
    %v122 = vld [vmem:[#allocation2 + $0x284] sm:$0xff]
    %v123 = vld [vmem:[#allocation2 + $0x28c] sm:$0xff]
    %v124 = vld [vmem:[#allocation2 + $0x294] sm:$0xff]
    %v125 = vld [vmem:[#allocation2 + $0x29c] sm:$0xf]
    %v126 = vld [vmem:[#allocation2 + $0x2a0] sm:$0xff]
    %v127 = vld [vmem:[#allocation2 + $0x2a8] sm:$0xff]
    %v128 = vld [vmem:[#allocation2 + $0x2b0] sm:$0xff]
    %v129 = vld [vmem:[#allocation2 + $0x2b8] sm:$0xff]
    %v130 = vld [vmem:[#allocation2 + $0x2c0] sm:$0xff]
    %v131 = vld [vmem:[#allocation2 + $0x2c8] sm:$0xff]
    %v132 = vld [vmem:[#allocation2 + $0x2d0] sm:$0xff]
    %v133 = vld [vmem:[#allocation2 + $0x2d8] sm:$0xff]
    %v134 = vld [vmem:[#allocation2 + $0x2e0] sm:$0xff]
    %v135 = vld [vmem:[#allocation2 + $0x2e8] sm:$0xff]
    %v136 = vld [vmem:[#allocation2 + $0x2f0] sm:$0xf]
    %v137 = vld [vmem:[#allocation2 + $0x2f4] sm:$0xff]
    %v138 = vld [vmem:[#allocation2 + $0x2fc] sm:$0xff]
    %v139 = vld [vmem:[#allocation2 + $0x304] sm:$0xff]
    %v140 = vld [vmem:[#allocation2 + $0x30c] sm:$0xff]
    %v141 = vld [vmem:[#allocation2 + $0x314] sm:$0xff]
    %v142 = vld [vmem:[#allocation2 + $0x31c] sm:$0xff]
    %v143 = vld [vmem:[#allocation2 + $0x324] sm:$0xff]
    %v144 = vld [vmem:[#allocation2 + $0x32c] sm:$0xff]
    %v145 = vld [vmem:[#allocation2 + $0x334] sm:$0xff]
    %v146 = vld [vmem:[#allocation2 + $0x33c] sm:$0xff]
    %v147 = vld [vmem:[#allocation2 + $0x344] sm:$0xf]
    %v148 = vld [vmem:[#allocation2 + $0x348] sm:$0xff]
    %v149 = vld [vmem:[#allocation2 + $0x350] sm:$0xff]
    %v150 = vld [vmem:[#allocation2 + $0x358] sm:$0xff]
    %v151 = vld [vmem:[#allocation2 + $0x360] sm:$0xff]
    %v152 = vld [vmem:[#allocation2 + $0x368] sm:$0xff]
    %v153 = vld [vmem:[#allocation2 + $0x370] sm:$0xff]
    %v154 = vld [vmem:[#allocation2 + $0x378] sm:$0xff]
    %v155 = vld [vmem:[#allocation2 + $0x380] sm:$0xff]
    %v156 = vld [vmem:[#allocation2 + $0x388] sm:$0xff]
    %v157 = vld [vmem:[#allocation2 + $0x390] sm:$0xff]
    %v158 = vld [vmem:[#allocation2 + $0x398] sm:$0xf]
    %v159 = vld [vmem:[#allocation2 + $0x39c] sm:$0xff]
    %v160 = vld [vmem:[#allocation2 + $0x3a4] sm:$0xff]
    %v161 = vld [vmem:[#allocation2 + $0x3ac] sm:$0xff]
    %v162 = vld [vmem:[#allocation2 + $0x3b4] sm:$0xff]
    %v163 = vld [vmem:[#allocation2 + $0x3bc] sm:$0xff]
    %v164 = vld [vmem:[#allocation2 + $0x3c4] sm:$0xff]
    %v165 = vld [vmem:[#allocation2 + $0x3cc] sm:$0xff]
    %v166 = vld [vmem:[#allocation2 + $0x3d4] sm:$0xff]
    %v167 = vld [vmem:[#allocation2 + $0x3dc] sm:$0xff]
    %v168 = vld [vmem:[#allocation2 + $0x3e4] sm:$0xff]
    %v169 = vld [vmem:[#allocation2 + $0x3ec] sm:$0xf]
    %v170 = vld [vmem:[#allocation2 + $0x3f0] sm:$0xff]
    %v171 = vld [vmem:[#allocation2 + $0x3f8] sm:$0xff]
    %v172 = vld [vmem:[#allocation2 + $0x400] sm:$0xff]
    %v173 = vld [vmem:[#allocation2 + $0x408] sm:$0xff]
    %v174 = vld [vmem:[#allocation2 + $0x410] sm:$0xff]
    %v175 = vld [vmem:[#allocation2 + $0x418] sm:$0xff]
    %v176 = vld [vmem:[#allocation2 + $0x420] sm:$0xff]
    %v177 = vld [vmem:[#allocation2 + $0x428] sm:$0xff]
    %v178 = vld [vmem:[#allocation2 + $0x430] sm:$0xff]
    %v179 = vld [vmem:[#allocation2 + $0x438] sm:$0xff]
    %v180 = vld [vmem:[#allocation2 + $0x440] sm:$0xf]
    %v181 = vld [vmem:[#allocation2 + $0x444] sm:$0xff]
    %v182 = vld [vmem:[#allocation2 + $0x44c] sm:$0xff]
    %v183 = vld [vmem:[#allocation2 + $0x454] sm:$0xff]
    %v184 = vld [vmem:[#allocation2 + $0x45c] sm:$0xff]
    %v185 = vld [vmem:[#allocation2 + $0x464] sm:$0xff]
    %v186 = vld [vmem:[#allocation2 + $0x46c] sm:$0xff]
    %v187 = vld [vmem:[#allocation2 + $0x474] sm:$0xff]
    %v188 = vld [vmem:[#allocation2 + $0x47c] sm:$0xff]
    %v189 = vld [vmem:[#allocation2 + $0x484] sm:$0xff]
    %v190 = vld [vmem:[#allocation2 + $0x48c] sm:$0xff]
    %v191 = vld [vmem:[#allocation2 + $0x494] sm:$0xf]
    %v192 = vld [vmem:[#allocation2 + $0x498] sm:$0xff]
    %v193 = vld [vmem:[#allocation2 + $0x4a0] sm:$0xff]
    %v194 = vld [vmem:[#allocation2 + $0x4a8] sm:$0xff]
    %v195 = vld [vmem:[#allocation2 + $0x4b0] sm:$0xff]
    %v196 = vld [vmem:[#allocation2 + $0x4b8] sm:$0xff]
    %v197 = vld [vmem:[#allocation2 + $0x4c0] sm:$0xff]
    %v198 = vld [vmem:[#allocation2 + $0x4c8] sm:$0xff]
    %v199 = vld [vmem:[#allocation2 + $0x4d0] sm:$0xff]
    %v200 = vld [vmem:[#allocation2 + $0x4d8] sm:$0xff]
    %v201 = vld [vmem:[#allocation2 + $0x4e0] sm:$0xff]
    %v202 = vld [vmem:[#allocation2 + $0x4e8] sm:$0xf]
    %v203 = vld [vmem:[#allocation2 + $0x4ec] sm:$0xff]
    %v204 = vld [vmem:[#allocation2 + $0x4f4] sm:$0xff]
    %v205 = vld [vmem:[#allocation2 + $0x4fc] sm:$0xff]
    %v206 = vld [vmem:[#allocation2 + $0x504] sm:$0xff]
    %v207 = vld [vmem:[#allocation2 + $0x50c] sm:$0xff]
    %v208 = vld [vmem:[#allocation2 + $0x514] sm:$0xff]
    %v209 = vld [vmem:[#allocation2 + $0x51c] sm:$0xff]
    %v210 = vld [vmem:[#allocation2 + $0x524] sm:$0xff]
    %v211 = vld [vmem:[#allocation2 + $0x52c] sm:$0xff]
    %v212 = vld [vmem:[#allocation2 + $0x534] sm:$0xff]
    %v213 = vld [vmem:[#allocation2 + $0x53c] sm:$0xf]
    %v214 = vld [vmem:[#allocation2 + $0x540] sm:$0xff]
    %v215 = vld [vmem:[#allocation2 + $0x548] sm:$0xff]
    %v216 = vld [vmem:[#allocation2 + $0x550] sm:$0xff]
    %v217 = vld [vmem:[#allocation2 + $0x558] sm:$0xff]
    %v218 = vld [vmem:[#allocation2 + $0x560] sm:$0xff]
    %v219 = vld [vmem:[#allocation2 + $0x568] sm:$0xff]
    %v220 = vld [vmem:[#allocation2 + $0x570] sm:$0xff]
    %v221 = vld [vmem:[#allocation2 + $0x578] sm:$0xff]
    %v222 = vld [vmem:[#allocation2 + $0x580] sm:$0xff]
    %v223 = vld [vmem:[#allocation2 + $0x588] sm:$0xff]
    %v224 = vld [vmem:[#allocation2 + $0x590] sm:$0xf]
    %v225 = vld [vmem:[#allocation2 + $0x594] sm:$0xff]
    %v226 = vld [vmem:[#allocation2 + $0x59c] sm:$0xff]
    %v227 = vld [vmem:[#allocation2 + $0x5a4] sm:$0xff]
    %v228 = vld [vmem:[#allocation2 + $0x5ac] sm:$0xff]
    %v229 = vld [vmem:[#allocation2 + $0x5b4] sm:$0xff]
    %v230 = vld [vmem:[#allocation2 + $0x5bc] sm:$0xff]
    %v231 = vld [vmem:[#allocation2 + $0x5c4] sm:$0xff]
    %v232 = vld [vmem:[#allocation2 + $0x5cc] sm:$0xff]
    %v233 = vld [vmem:[#allocation2 + $0x5d4] sm:$0xff]
    %v234 = vld [vmem:[#allocation2 + $0x5dc] sm:$0xff]
    %v235 = vld [vmem:[#allocation2 + $0x5e4] sm:$0xf]
    %v236 = vld [vmem:[#allocation2 + $0x5e8] sm:$0x11]
    %v237 = vld [vmem:[#allocation2 + $0x5f0] sm:$0x11]
    %v238 = vld [vmem:[#allocation2 + $0x5f8] sm:$0x11]
    %v239 = vld [vmem:[#allocation2 + $0x600] sm:$0x11]
    %v240 = vld [vmem:[#allocation2 + $0x608] sm:$0x11]
    %v241 = vld [vmem:[#allocation2 + $0x610] sm:$0x11]
    %v242 = vld [vmem:[#allocation2 + $0x618] sm:$0x11]
    %v243 = vld [vmem:[#allocation2 + $0x620] sm:$0x11]
    %v244 = vld [vmem:[#allocation2 + $0x628] sm:$0x11]
    %v245 = vld [vmem:[#allocation2 + $0x630] sm:$0x11]
    %v246 = vld [vmem:[#allocation2 + $0x638] sm:$0x1]
    %v247 = vld [vmem:[%s3] sm:$0xff]
    %v248 = vld [vmem:[%s3 + $0x8] sm:$0xff]
    %v249 = vld [vmem:[%s3 + $0x10] sm:$0x1f]
    %v253 = vlaneseq
    %v254 = vshrl.u32 %v253, 7
    %v255 = vsub.s32 0, %v254
    %v256 = vrot.slane %v247, %v255
    %v257 = vlaneseq
    %v258 = vshrl.u32 %v257, 7
    %v259 = vsub.s32 1, %v258
    %v260 = vrot.slane %v247, %v259
    %v261 = vlaneseq
    %v262 = vshrl.u32 %v261, 7
    %v263 = vsub.s32 2, %v262
    %v264 = vrot.slane %v247, %v263
    %v265 = vlaneseq
    %v266 = vshrl.u32 %v265, 7
    %v267 = vsub.s32 3, %v266
    %v268 = vrot.slane %v247, %v267
    %v269 = vlaneseq
    %v270 = vshrl.u32 %v269, 7
    %v271 = vsub.s32 4, %v270
    %v272 = vrot.slane %v247, %v271
    %v273 = vlaneseq
    %v274 = vshrl.u32 %v273, 7
    %v275 = vsub.s32 5, %v274
    %v276 = vrot.slane %v247, %v275
    %v277 = vlaneseq
    %v278 = vshrl.u32 %v277, 7
    %v279 = vsub.s32 6, %v278
    %v280 = vrot.slane %v247, %v279
    %v281 = vlaneseq
    %v282 = vshrl.u32 %v281, 7
    %v283 = vsub.s32 7, %v282
    %v284 = vrot.slane %v247, %v283
    %v285 = vlaneseq
    %v286 = vshrl.u32 %v285, 7
    %v287 = vsub.s32 0, %v286
    %v288 = vrot.slane %v248, %v287
    %v289 = vlaneseq
    %v290 = vshrl.u32 %v289, 7
    %v291 = vsub.s32 1, %v290
    %v292 = vrot.slane %v248, %v291
    %v293 = vlaneseq
    %v294 = vshrl.u32 %v293, 7
    %v295 = vsub.s32 2, %v294
    %v296 = vrot.slane %v248, %v295
    %v297 = vlaneseq
    %v298 = vshrl.u32 %v297, 7
    %v299 = vsub.s32 3, %v298
    %v300 = vrot.slane %v248, %v299
    %v301 = vlaneseq
    %v302 = vshrl.u32 %v301, 7
    %v303 = vsub.s32 4, %v302
    %v304 = vrot.slane %v248, %v303
    %v305 = vlaneseq
    %v306 = vshrl.u32 %v305, 7
    %v307 = vsub.s32 5, %v306
    %v308 = vrot.slane %v248, %v307
    %v309 = vlaneseq
    %v310 = vshrl.u32 %v309, 7
    %v311 = vsub.s32 6, %v310
    %v312 = vrot.slane %v248, %v311
    %v313 = vlaneseq
    %v314 = vshrl.u32 %v313, 7
    %v315 = vsub.s32 7, %v314
    %v316 = vrot.slane %v248, %v315
    %v317 = vlaneseq
    %v318 = vshrl.u32 %v317, 7
    %v319 = vsub.s32 0, %v318
    %v320 = vrot.slane %v249, %v319
    %v321 = vlaneseq
    %v322 = vshrl.u32 %v321, 7
    %v323 = vsub.s32 1, %v322
    %v324 = vrot.slane %v249, %v323
    %v325 = vlaneseq
    %v326 = vshrl.u32 %v325, 7
    %v327 = vsub.s32 2, %v326
    %v328 = vrot.slane %v249, %v327
    %v329 = vlaneseq
    %v330 = vshrl.u32 %v329, 7
    %v331 = vsub.s32 3, %v330
    %v332 = vrot.slane %v249, %v331
    %v333 = vlaneseq
    %v334 = vshrl.u32 %v333, 7
    %v335 = vsub.s32 4, %v334
    %v336 = vrot.slane %v249, %v335
    %v360 = vunpack.c.l.b16 %v36
    %v361 = vunpack.c.h.b16 %v36
    %v362 = vunpack.c.l.b16 %v37
    %v363 = vunpack.c.h.b16 %v37
    %v364 = vpack.c.b16 %v362, %v360
    %v365 = vpack.c.b16 %v363, %v361
    %v576 = vunpack.c.l.b16 %v38
    %v577 = vunpack.c.h.b16 %v38
    %v578 = vunpack.c.l.b16 %v39
    %v579 = vunpack.c.h.b16 %v39
    %v580 = vunpack.c.l.b16 %v40
    %v581 = vunpack.c.h.b16 %v40
    %v582 = vunpack.c.l.b16 %v41
    %v583 = vunpack.c.h.b16 %v41
    %v584 = vunpack.c.l.b16 %v42
    %v585 = vunpack.c.h.b16 %v42
    %v586 = vunpack.c.l.b16 %v43
    %v587 = vunpack.c.h.b16 %v43
    %v588 = vunpack.c.l.b16 %v44
    %v589 = vunpack.c.h.b16 %v44
    %v590 = vunpack.c.l.b16 %v45
    %v591 = vunpack.c.h.b16 %v45
    %v592 = vunpack.c.l.b16 %v46
    %v593 = vunpack.c.h.b16 %v46
    %v594 = vunpack.c.l.b16 %v47
    %v595 = vunpack.c.h.b16 %v47
    %v596 = vunpack.c.l.b16 %v48
    %v597 = vunpack.c.l.b16 %v49
    %v598 = vunpack.c.h.b16 %v49
    %v599 = vunpack.c.l.b16 %v50
    %v600 = vunpack.c.h.b16 %v50
    %v601 = vunpack.c.l.b16 %v51
    %v602 = vunpack.c.h.b16 %v51
    %v603 = vunpack.c.l.b16 %v52
    %v604 = vunpack.c.h.b16 %v52
    %v605 = vunpack.c.l.b16 %v53
    %v606 = vunpack.c.h.b16 %v53
    %v607 = vunpack.c.l.b16 %v54
    %v608 = vunpack.c.h.b16 %v54
    %v609 = vunpack.c.l.b16 %v55
    %v610 = vunpack.c.h.b16 %v55
    %v611 = vunpack.c.l.b16 %v56
    %v612 = vunpack.c.h.b16 %v56
    %v613 = vunpack.c.l.b16 %v57
    %v614 = vunpack.c.h.b16 %v57
    %v615 = vunpack.c.l.b16 %v58
    %v616 = vunpack.c.h.b16 %v58
    %v617 = vunpack.c.l.b16 %v59
    %v618 = vunpack.c.l.b16 %v60
    %v619 = vunpack.c.h.b16 %v60
    %v620 = vunpack.c.l.b16 %v61
    %v621 = vunpack.c.h.b16 %v61
    %v622 = vunpack.c.l.b16 %v62
    %v623 = vunpack.c.h.b16 %v62
    %v624 = vunpack.c.l.b16 %v63
    %v625 = vunpack.c.h.b16 %v63
    %v626 = vunpack.c.l.b16 %v64
    %v627 = vunpack.c.h.b16 %v64
    %v628 = vunpack.c.l.b16 %v65
    %v629 = vunpack.c.h.b16 %v65
    %v630 = vunpack.c.l.b16 %v66
    %v631 = vunpack.c.h.b16 %v66
    %v632 = vunpack.c.l.b16 %v67
    %v633 = vunpack.c.h.b16 %v67
    %v634 = vunpack.c.l.b16 %v68
    %v635 = vunpack.c.h.b16 %v68
    %v636 = vunpack.c.l.b16 %v69
    %v637 = vunpack.c.h.b16 %v69
    %v638 = vunpack.c.l.b16 %v70
    %v639 = vunpack.c.l.b16 %v71
    %v640 = vunpack.c.h.b16 %v71
    %v641 = vunpack.c.l.b16 %v72
    %v642 = vunpack.c.h.b16 %v72
    %v643 = vunpack.c.l.b16 %v73
    %v644 = vunpack.c.h.b16 %v73
    %v645 = vunpack.c.l.b16 %v74
    %v646 = vunpack.c.h.b16 %v74
    %v647 = vunpack.c.l.b16 %v75
    %v648 = vunpack.c.h.b16 %v75
    %v649 = vunpack.c.l.b16 %v76
    %v650 = vunpack.c.h.b16 %v76
    %v651 = vunpack.c.l.b16 %v77
    %v652 = vunpack.c.h.b16 %v77
    %v653 = vunpack.c.l.b16 %v78
    %v654 = vunpack.c.h.b16 %v78
    %v655 = vunpack.c.l.b16 %v79
    %v656 = vunpack.c.h.b16 %v79
    %v657 = vunpack.c.l.b16 %v80
    %v658 = vunpack.c.h.b16 %v80
    %v659 = vunpack.c.l.b16 %v81
    %v660 = vunpack.c.l.b16 %v82
    %v661 = vunpack.c.h.b16 %v82
    %v662 = vunpack.c.l.b16 %v83
    %v663 = vunpack.c.h.b16 %v83
    %v664 = vunpack.c.l.b16 %v84
    %v665 = vunpack.c.h.b16 %v84
    %v666 = vunpack.c.l.b16 %v85
    %v667 = vunpack.c.h.b16 %v85
    %v668 = vunpack.c.l.b16 %v86
    %v669 = vunpack.c.h.b16 %v86
    %v670 = vunpack.c.l.b16 %v87
    %v671 = vunpack.c.h.b16 %v87
    %v672 = vunpack.c.l.b16 %v88
    %v673 = vunpack.c.h.b16 %v88
    %v674 = vunpack.c.l.b16 %v89
    %v675 = vunpack.c.h.b16 %v89
    %v676 = vunpack.c.l.b16 %v90
    %v677 = vunpack.c.h.b16 %v90
    %v678 = vunpack.c.l.b16 %v91
    %v679 = vunpack.c.h.b16 %v91
    %v680 = vunpack.c.l.b16 %v92
    %v681 = vunpack.c.l.b16 %v93
    %v682 = vunpack.c.h.b16 %v93
    %v683 = vunpack.c.l.b16 %v94
    %v684 = vunpack.c.h.b16 %v94
    %v685 = vunpack.c.l.b16 %v95
    %v686 = vunpack.c.h.b16 %v95
    %v687 = vunpack.c.l.b16 %v96
    %v688 = vunpack.c.h.b16 %v96
    %v689 = vunpack.c.l.b16 %v97
    %v690 = vunpack.c.h.b16 %v97
    %v691 = vunpack.c.l.b16 %v98
    %v692 = vunpack.c.h.b16 %v98
    %v693 = vunpack.c.l.b16 %v99
    %v694 = vunpack.c.h.b16 %v99
    %v695 = vunpack.c.l.b16 %v100
    %v696 = vunpack.c.h.b16 %v100
    %v697 = vunpack.c.l.b16 %v101
    %v698 = vunpack.c.h.b16 %v101
    %v699 = vunpack.c.l.b16 %v102
    %v700 = vunpack.c.h.b16 %v102
    %v701 = vunpack.c.l.b16 %v103
    %v702 = vunpack.c.l.b16 %v104
    %v703 = vunpack.c.h.b16 %v104
    %v704 = vunpack.c.l.b16 %v105
    %v705 = vunpack.c.h.b16 %v105
    %v706 = vunpack.c.l.b16 %v106
    %v707 = vunpack.c.h.b16 %v106
    %v708 = vunpack.c.l.b16 %v107
    %v709 = vunpack.c.h.b16 %v107
    %v710 = vunpack.c.l.b16 %v108
    %v711 = vunpack.c.h.b16 %v108
    %v712 = vunpack.c.l.b16 %v109
    %v713 = vunpack.c.h.b16 %v109
    %v714 = vunpack.c.l.b16 %v110
    %v715 = vunpack.c.h.b16 %v110
    %v716 = vunpack.c.l.b16 %v111
    %v717 = vunpack.c.h.b16 %v111
    %v718 = vunpack.c.l.b16 %v112
    %v719 = vunpack.c.h.b16 %v112
    %v720 = vunpack.c.l.b16 %v113
    %v721 = vunpack.c.h.b16 %v113
    %v722 = vunpack.c.l.b16 %v114
    %v723 = vunpack.c.l.b16 %v115
    %v724 = vunpack.c.h.b16 %v115
    %v725 = vunpack.c.l.b16 %v116
    %v726 = vunpack.c.h.b16 %v116
    %v727 = vunpack.c.l.b16 %v117
    %v728 = vunpack.c.h.b16 %v117
    %v729 = vunpack.c.l.b16 %v118
    %v730 = vunpack.c.h.b16 %v118
    %v731 = vunpack.c.l.b16 %v119
    %v732 = vunpack.c.h.b16 %v119
    %v733 = vunpack.c.l.b16 %v120
    %v734 = vunpack.c.h.b16 %v120
    %v735 = vunpack.c.l.b16 %v121
    %v736 = vunpack.c.h.b16 %v121
    %v737 = vunpack.c.l.b16 %v122
    %v738 = vunpack.c.h.b16 %v122
    %v739 = vunpack.c.l.b16 %v123
    %v740 = vunpack.c.h.b16 %v123
    %v741 = vunpack.c.l.b16 %v124
    %v742 = vunpack.c.h.b16 %v124
    %v743 = vunpack.c.l.b16 %v125
    %v744 = vunpack.c.l.b16 %v126
    %v745 = vunpack.c.h.b16 %v126
    %v746 = vunpack.c.l.b16 %v127
    %v747 = vunpack.c.h.b16 %v127
    %v748 = vunpack.c.l.b16 %v128
    %v749 = vunpack.c.h.b16 %v128
    %v750 = vunpack.c.l.b16 %v129
    %v751 = vunpack.c.h.b16 %v129
    %v752 = vunpack.c.l.b16 %v130
    %v753 = vunpack.c.h.b16 %v130
    %v754 = vunpack.c.l.b16 %v131
    %v755 = vunpack.c.h.b16 %v131
    %v756 = vunpack.c.l.b16 %v132
    %v757 = vunpack.c.h.b16 %v132
    %v758 = vunpack.c.l.b16 %v133
    %v759 = vunpack.c.h.b16 %v133
    %v760 = vunpack.c.l.b16 %v134
    %v761 = vunpack.c.h.b16 %v134
    %v762 = vunpack.c.l.b16 %v135
    %v763 = vunpack.c.h.b16 %v135
    %v764 = vunpack.c.l.b16 %v136
    %v765 = vunpack.c.l.b16 %v137
    %v766 = vunpack.c.h.b16 %v137
    %v767 = vunpack.c.l.b16 %v138
    %v768 = vunpack.c.h.b16 %v138
    %v769 = vunpack.c.l.b16 %v139
    %v770 = vunpack.c.h.b16 %v139
    %v771 = vunpack.c.l.b16 %v140
    %v772 = vunpack.c.h.b16 %v140
    %v773 = vunpack.c.l.b16 %v141
    %v774 = vunpack.c.h.b16 %v141
    %v775 = vunpack.c.l.b16 %v142
    %v776 = vunpack.c.h.b16 %v142
    %v777 = vunpack.c.l.b16 %v143
    %v778 = vunpack.c.h.b16 %v143
    %v779 = vunpack.c.l.b16 %v144
    %v780 = vunpack.c.h.b16 %v144
    %v781 = vunpack.c.l.b16 %v145
    %v782 = vunpack.c.h.b16 %v145
    %v783 = vunpack.c.l.b16 %v146
    %v784 = vunpack.c.h.b16 %v146
    %v785 = vunpack.c.l.b16 %v147
    %v786 = vunpack.c.l.b16 %v148
    %v787 = vunpack.c.h.b16 %v148
    %v788 = vunpack.c.l.b16 %v149
    %v789 = vunpack.c.h.b16 %v149
    %v790 = vunpack.c.l.b16 %v150
    %v791 = vunpack.c.h.b16 %v150
    %v792 = vunpack.c.l.b16 %v151
    %v793 = vunpack.c.h.b16 %v151
    %v794 = vunpack.c.l.b16 %v152
    %v795 = vunpack.c.h.b16 %v152
    %v796 = vunpack.c.l.b16 %v153
    %v797 = vunpack.c.h.b16 %v153
    %v798 = vunpack.c.l.b16 %v154
    %v799 = vunpack.c.h.b16 %v154
    %v800 = vunpack.c.l.b16 %v155
    %v801 = vunpack.c.h.b16 %v155
    %v802 = vunpack.c.l.b16 %v156
    %v803 = vunpack.c.h.b16 %v156
    %v804 = vunpack.c.l.b16 %v157
    %v805 = vunpack.c.h.b16 %v157
    %v806 = vunpack.c.l.b16 %v158
    %v807 = vunpack.c.l.b16 %v159
    %v808 = vunpack.c.h.b16 %v159
    %v809 = vunpack.c.l.b16 %v160
    %v810 = vunpack.c.h.b16 %v160
    %v811 = vunpack.c.l.b16 %v161
    %v812 = vunpack.c.h.b16 %v161
    %v813 = vunpack.c.l.b16 %v162
    %v814 = vunpack.c.h.b16 %v162
    %v815 = vunpack.c.l.b16 %v163
    %v816 = vunpack.c.h.b16 %v163
    %v817 = vunpack.c.l.b16 %v164
    %v818 = vunpack.c.h.b16 %v164
    %v819 = vunpack.c.l.b16 %v165
    %v820 = vunpack.c.h.b16 %v165
    %v821 = vunpack.c.l.b16 %v166
    %v822 = vunpack.c.h.b16 %v166
    %v823 = vunpack.c.l.b16 %v167
    %v824 = vunpack.c.h.b16 %v167
    %v825 = vunpack.c.l.b16 %v168
    %v826 = vunpack.c.h.b16 %v168
    %v827 = vunpack.c.l.b16 %v169
    %v828 = vunpack.c.l.b16 %v170
    %v829 = vunpack.c.h.b16 %v170
    %v830 = vunpack.c.l.b16 %v171
    %v831 = vunpack.c.h.b16 %v171
    %v832 = vunpack.c.l.b16 %v172
    %v833 = vunpack.c.h.b16 %v172
    %v834 = vunpack.c.l.b16 %v173
    %v835 = vunpack.c.h.b16 %v173
    %v836 = vunpack.c.l.b16 %v174
    %v837 = vunpack.c.h.b16 %v174
    %v838 = vunpack.c.l.b16 %v175
    %v839 = vunpack.c.h.b16 %v175
    %v840 = vunpack.c.l.b16 %v176
    %v841 = vunpack.c.h.b16 %v176
    %v842 = vunpack.c.l.b16 %v177
    %v843 = vunpack.c.h.b16 %v177
    %v844 = vunpack.c.l.b16 %v178
    %v845 = vunpack.c.h.b16 %v178
    %v846 = vunpack.c.l.b16 %v179
    %v847 = vunpack.c.h.b16 %v179
    %v848 = vunpack.c.l.b16 %v180
    %v849 = vunpack.c.l.b16 %v181
    %v850 = vunpack.c.h.b16 %v181
    %v851 = vunpack.c.l.b16 %v182
    %v852 = vunpack.c.h.b16 %v182
    %v853 = vunpack.c.l.b16 %v183
    %v854 = vunpack.c.h.b16 %v183
    %v855 = vunpack.c.l.b16 %v184
    %v856 = vunpack.c.h.b16 %v184
    %v857 = vunpack.c.l.b16 %v185
    %v858 = vunpack.c.h.b16 %v185
    %v859 = vunpack.c.l.b16 %v186
    %v860 = vunpack.c.h.b16 %v186
    %v861 = vunpack.c.l.b16 %v187
    %v862 = vunpack.c.h.b16 %v187
    %v863 = vunpack.c.l.b16 %v188
    %v864 = vunpack.c.h.b16 %v188
    %v865 = vunpack.c.l.b16 %v189
    %v866 = vunpack.c.h.b16 %v189
    %v867 = vunpack.c.l.b16 %v190
    %v868 = vunpack.c.h.b16 %v190
    %v869 = vunpack.c.l.b16 %v191
    %v870 = vunpack.c.l.b16 %v192
    %v871 = vunpack.c.h.b16 %v192
    %v872 = vunpack.c.l.b16 %v193
    %v873 = vunpack.c.h.b16 %v193
    %v874 = vunpack.c.l.b16 %v194
    %v875 = vunpack.c.h.b16 %v194
    %v876 = vunpack.c.l.b16 %v195
    %v877 = vunpack.c.h.b16 %v195
    %v878 = vunpack.c.l.b16 %v196
    %v879 = vunpack.c.h.b16 %v196
    %v880 = vunpack.c.l.b16 %v197
    %v881 = vunpack.c.h.b16 %v197
    %v882 = vunpack.c.l.b16 %v198
    %v883 = vunpack.c.h.b16 %v198
    %v884 = vunpack.c.l.b16 %v199
    %v885 = vunpack.c.h.b16 %v199
    %v886 = vunpack.c.l.b16 %v200
    %v887 = vunpack.c.h.b16 %v200
    %v888 = vunpack.c.l.b16 %v201
    %v889 = vunpack.c.h.b16 %v201
    %v890 = vunpack.c.l.b16 %v202
    %v891 = vunpack.c.l.b16 %v203
    %v892 = vunpack.c.h.b16 %v203
    %v893 = vunpack.c.l.b16 %v204
    %v894 = vunpack.c.h.b16 %v204
    %v895 = vunpack.c.l.b16 %v205
    %v896 = vunpack.c.h.b16 %v205
    %v897 = vunpack.c.l.b16 %v206
    %v898 = vunpack.c.h.b16 %v206
    %v899 = vunpack.c.l.b16 %v207
    %v900 = vunpack.c.h.b16 %v207
    %v901 = vunpack.c.l.b16 %v208
    %v902 = vunpack.c.h.b16 %v208
    %v903 = vunpack.c.l.b16 %v209
    %v904 = vunpack.c.h.b16 %v209
    %v905 = vunpack.c.l.b16 %v210
    %v906 = vunpack.c.h.b16 %v210
    %v907 = vunpack.c.l.b16 %v211
    %v908 = vunpack.c.h.b16 %v211
    %v909 = vunpack.c.l.b16 %v212
    %v910 = vunpack.c.h.b16 %v212
    %v911 = vunpack.c.l.b16 %v213
    %v912 = vunpack.c.l.b16 %v214
    %v913 = vunpack.c.h.b16 %v214
    %v914 = vunpack.c.l.b16 %v215
    %v915 = vunpack.c.h.b16 %v215
    %v916 = vunpack.c.l.b16 %v216
    %v917 = vunpack.c.h.b16 %v216
    %v918 = vunpack.c.l.b16 %v217
    %v919 = vunpack.c.h.b16 %v217
    %v920 = vunpack.c.l.b16 %v218
    %v921 = vunpack.c.h.b16 %v218
    %v922 = vunpack.c.l.b16 %v219
    %v923 = vunpack.c.h.b16 %v219
    %v924 = vunpack.c.l.b16 %v220
    %v925 = vunpack.c.h.b16 %v220
    %v926 = vunpack.c.l.b16 %v221
    %v927 = vunpack.c.h.b16 %v221
    %v928 = vunpack.c.l.b16 %v222
    %v929 = vunpack.c.h.b16 %v222
    %v930 = vunpack.c.l.b16 %v223
    %v931 = vunpack.c.h.b16 %v223
    %v932 = vunpack.c.l.b16 %v224
    %v933 = vunpack.c.l.b16 %v225
    %v934 = vunpack.c.h.b16 %v225
    %v935 = vunpack.c.l.b16 %v226
    %v936 = vunpack.c.h.b16 %v226
    %v937 = vunpack.c.l.b16 %v227
    %v938 = vunpack.c.h.b16 %v227
    %v939 = vunpack.c.l.b16 %v228
    %v940 = vunpack.c.h.b16 %v228
    %v941 = vunpack.c.l.b16 %v229
    %v942 = vunpack.c.h.b16 %v229
    %v943 = vunpack.c.l.b16 %v230
    %v944 = vunpack.c.h.b16 %v230
    %v945 = vunpack.c.l.b16 %v231
    %v946 = vunpack.c.h.b16 %v231
    %v947 = vunpack.c.l.b16 %v232
    %v948 = vunpack.c.h.b16 %v232
    %v949 = vunpack.c.l.b16 %v233
    %v950 = vunpack.c.h.b16 %v233
    %v951 = vunpack.c.l.b16 %v234
    %v952 = vunpack.c.h.b16 %v234
    %v953 = vunpack.c.l.b16 %v235
    %v954 = vunpack.c.l.b16 %v236
    %v955 = vunpack.c.h.b16 %v236
    %v956 = vunpack.c.l.b16 %v237
    %v957 = vunpack.c.h.b16 %v237
    %v958 = vunpack.c.l.b16 %v238
    %v959 = vunpack.c.h.b16 %v238
    %v960 = vunpack.c.l.b16 %v239
    %v961 = vunpack.c.h.b16 %v239
    %v962 = vunpack.c.l.b16 %v240
    %v963 = vunpack.c.h.b16 %v240
    %v964 = vunpack.c.l.b16 %v241
    %v965 = vunpack.c.h.b16 %v241
    %v966 = vunpack.c.l.b16 %v242
    %v967 = vunpack.c.h.b16 %v242
    %v968 = vunpack.c.l.b16 %v243
    %v969 = vunpack.c.h.b16 %v243
    %v970 = vunpack.c.l.b16 %v244
    %v971 = vunpack.c.h.b16 %v244
    %v972 = vunpack.c.l.b16 %v245
    %v973 = vunpack.c.h.b16 %v245
    %v974 = vunpack.c.l.b16 %v246
    %v975 = vpack.c.b16 %v597, %v576
    %v976 = vpack.c.b16 %v598, %v577
    %v977 = vpack.c.b16 %v599, %v578
    %v978 = vpack.c.b16 %v600, %v579
    %v979 = vpack.c.b16 %v601, %v580
    %v980 = vpack.c.b16 %v602, %v581
    %v981 = vpack.c.b16 %v603, %v582
    %v982 = vpack.c.b16 %v604, %v583
    %v983 = vpack.c.b16 %v605, %v584
    %v984 = vpack.c.b16 %v606, %v585
    %v985 = vpack.c.b16 %v607, %v586
    %v986 = vpack.c.b16 %v608, %v587
    %v987 = vpack.c.b16 %v609, %v588
    %v988 = vpack.c.b16 %v610, %v589
    %v989 = vpack.c.b16 %v611, %v590
    %v990 = vpack.c.b16 %v612, %v591
    %v991 = vpack.c.b16 %v613, %v592
    %v992 = vpack.c.b16 %v614, %v593
    %v993 = vpack.c.b16 %v615, %v594
    %v994 = vpack.c.b16 %v616, %v595
    %v995 = vpack.c.b16 %v617, %v596
    %v996 = vpack.c.b16 %v639, %v618
    %v997 = vpack.c.b16 %v640, %v619
    %v998 = vpack.c.b16 %v641, %v620
    %v999 = vpack.c.b16 %v642, %v621
    %v1000 = vpack.c.b16 %v643, %v622
    %v1001 = vpack.c.b16 %v644, %v623
    %v1002 = vpack.c.b16 %v645, %v624
    %v1003 = vpack.c.b16 %v646, %v625
    %v1004 = vpack.c.b16 %v647, %v626
    %v1005 = vpack.c.b16 %v648, %v627
    %v1006 = vpack.c.b16 %v649, %v628
    %v1007 = vpack.c.b16 %v650, %v629
    %v1008 = vpack.c.b16 %v651, %v630
    %v1009 = vpack.c.b16 %v652, %v631
    %v1010 = vpack.c.b16 %v653, %v632
    %v1011 = vpack.c.b16 %v654, %v633
    %v1012 = vpack.c.b16 %v655, %v634
    %v1013 = vpack.c.b16 %v656, %v635
    %v1014 = vpack.c.b16 %v657, %v636
    %v1015 = vpack.c.b16 %v658, %v637
    %v1016 = vpack.c.b16 %v659, %v638
    %v1017 = vpack.c.b16 %v681, %v660
    %v1018 = vpack.c.b16 %v682, %v661
    %v1019 = vpack.c.b16 %v683, %v662
    %v1020 = vpack.c.b16 %v684, %v663
    %v1021 = vpack.c.b16 %v685, %v664
    %v1022 = vpack.c.b16 %v686, %v665
    %v1023 = vpack.c.b16 %v687, %v666
    %v1024 = vpack.c.b16 %v688, %v667
    %v1025 = vpack.c.b16 %v689, %v668
    %v1026 = vpack.c.b16 %v690, %v669
    %v1027 = vpack.c.b16 %v691, %v670
    %v1028 = vpack.c.b16 %v692, %v671
    %v1029 = vpack.c.b16 %v693, %v672
    %v1030 = vpack.c.b16 %v694, %v673
    %v1031 = vpack.c.b16 %v695, %v674
    %v1032 = vpack.c.b16 %v696, %v675
    %v1033 = vpack.c.b16 %v697, %v676
    %v1034 = vpack.c.b16 %v698, %v677
    %v1035 = vpack.c.b16 %v699, %v678
    %v1036 = vpack.c.b16 %v700, %v679
    %v1037 = vpack.c.b16 %v701, %v680
    %v1038 = vpack.c.b16 %v723, %v702
    %v1039 = vpack.c.b16 %v724, %v703
    %v1040 = vpack.c.b16 %v725, %v704
    %v1041 = vpack.c.b16 %v726, %v705
    %v1042 = vpack.c.b16 %v727, %v706
    %v1043 = vpack.c.b16 %v728, %v707
    %v1044 = vpack.c.b16 %v729, %v708
    %v1045 = vpack.c.b16 %v730, %v709
    %v1046 = vpack.c.b16 %v731, %v710
    %v1047 = vpack.c.b16 %v732, %v711
    %v1048 = vpack.c.b16 %v733, %v712
    %v1049 = vpack.c.b16 %v734, %v713
    %v1050 = vpack.c.b16 %v735, %v714
    %v1051 = vpack.c.b16 %v736, %v715
    %v1052 = vpack.c.b16 %v737, %v716
    %v1053 = vpack.c.b16 %v738, %v717
    %v1054 = vpack.c.b16 %v739, %v718
    %v1055 = vpack.c.b16 %v740, %v719
    %v1056 = vpack.c.b16 %v741, %v720
    %v1057 = vpack.c.b16 %v742, %v721
    %v1058 = vpack.c.b16 %v743, %v722
    %v1059 = vpack.c.b16 %v765, %v744
    %v1060 = vpack.c.b16 %v766, %v745
    %v1061 = vpack.c.b16 %v767, %v746
    %v1062 = vpack.c.b16 %v768, %v747
    %v1063 = vpack.c.b16 %v769, %v748
    %v1064 = vpack.c.b16 %v770, %v749
    %v1065 = vpack.c.b16 %v771, %v750
    %v1066 = vpack.c.b16 %v772, %v751
    %v1067 = vpack.c.b16 %v773, %v752
    %v1068 = vpack.c.b16 %v774, %v753
    %v1069 = vpack.c.b16 %v775, %v754
    %v1070 = vpack.c.b16 %v776, %v755
    %v1071 = vpack.c.b16 %v777, %v756
    %v1072 = vpack.c.b16 %v778, %v757
    %v1073 = vpack.c.b16 %v779, %v758
    %v1074 = vpack.c.b16 %v780, %v759
    %v1075 = vpack.c.b16 %v781, %v760
    %v1076 = vpack.c.b16 %v782, %v761
    %v1077 = vpack.c.b16 %v783, %v762
    %v1078 = vpack.c.b16 %v784, %v763
    %v1079 = vpack.c.b16 %v785, %v764
    %v1080 = vpack.c.b16 %v807, %v786
    %v1081 = vpack.c.b16 %v808, %v787
    %v1082 = vpack.c.b16 %v809, %v788
    %v1083 = vpack.c.b16 %v810, %v789
    %v1084 = vpack.c.b16 %v811, %v790
    %v1085 = vpack.c.b16 %v812, %v791
    %v1086 = vpack.c.b16 %v813, %v792
    %v1087 = vpack.c.b16 %v814, %v793
    %v1088 = vpack.c.b16 %v815, %v794
    %v1089 = vpack.c.b16 %v816, %v795
    %v1090 = vpack.c.b16 %v817, %v796
    %v1091 = vpack.c.b16 %v818, %v797
    %v1092 = vpack.c.b16 %v819, %v798
    %v1093 = vpack.c.b16 %v820, %v799
    %v1094 = vpack.c.b16 %v821, %v800
    %v1095 = vpack.c.b16 %v822, %v801
    %v1096 = vpack.c.b16 %v823, %v802
    %v1097 = vpack.c.b16 %v824, %v803
    %v1098 = vpack.c.b16 %v825, %v804
    %v1099 = vpack.c.b16 %v826, %v805
    %v1100 = vpack.c.b16 %v827, %v806
    %v1101 = vpack.c.b16 %v849, %v828
    %v1102 = vpack.c.b16 %v850, %v829
    %v1103 = vpack.c.b16 %v851, %v830
    %v1104 = vpack.c.b16 %v852, %v831
    %v1105 = vpack.c.b16 %v853, %v832
    %v1106 = vpack.c.b16 %v854, %v833
    %v1107 = vpack.c.b16 %v855, %v834
    %v1108 = vpack.c.b16 %v856, %v835
    %v1109 = vpack.c.b16 %v857, %v836
    %v1110 = vpack.c.b16 %v858, %v837
    %v1111 = vpack.c.b16 %v859, %v838
    %v1112 = vpack.c.b16 %v860, %v839
    %v1113 = vpack.c.b16 %v861, %v840
    %v1114 = vpack.c.b16 %v862, %v841
    %v1115 = vpack.c.b16 %v863, %v842
    %v1116 = vpack.c.b16 %v864, %v843
    %v1117 = vpack.c.b16 %v865, %v844
    %v1118 = vpack.c.b16 %v866, %v845
    %v1119 = vpack.c.b16 %v867, %v846
    %v1120 = vpack.c.b16 %v868, %v847
    %v1121 = vpack.c.b16 %v869, %v848
    %v1122 = vpack.c.b16 %v891, %v870
    %v1123 = vpack.c.b16 %v892, %v871
    %v1124 = vpack.c.b16 %v893, %v872
    %v1125 = vpack.c.b16 %v894, %v873
    %v1126 = vpack.c.b16 %v895, %v874
    %v1127 = vpack.c.b16 %v896, %v875
    %v1128 = vpack.c.b16 %v897, %v876
    %v1129 = vpack.c.b16 %v898, %v877
    %v1130 = vpack.c.b16 %v899, %v878
    %v1131 = vpack.c.b16 %v900, %v879
    %v1132 = vpack.c.b16 %v901, %v880
    %v1133 = vpack.c.b16 %v902, %v881
    %v1134 = vpack.c.b16 %v903, %v882
    %v1135 = vpack.c.b16 %v904, %v883
    %v1136 = vpack.c.b16 %v905, %v884
    %v1137 = vpack.c.b16 %v906, %v885
    %v1138 = vpack.c.b16 %v907, %v886
    %v1139 = vpack.c.b16 %v908, %v887
    %v1140 = vpack.c.b16 %v909, %v888
    %v1141 = vpack.c.b16 %v910, %v889
    %v1142 = vpack.c.b16 %v911, %v890
    %v1143 = vpack.c.b16 %v933, %v912
    %v1144 = vpack.c.b16 %v934, %v913
    %v1145 = vpack.c.b16 %v935, %v914
    %v1146 = vpack.c.b16 %v936, %v915
    %v1147 = vpack.c.b16 %v937, %v916
    %v1148 = vpack.c.b16 %v938, %v917
    %v1149 = vpack.c.b16 %v939, %v918
    %v1150 = vpack.c.b16 %v940, %v919
    %v1151 = vpack.c.b16 %v941, %v920
    %v1152 = vpack.c.b16 %v942, %v921
    %v1153 = vpack.c.b16 %v943, %v922
    %v1154 = vpack.c.b16 %v944, %v923
    %v1155 = vpack.c.b16 %v945, %v924
    %v1156 = vpack.c.b16 %v946, %v925
    %v1157 = vpack.c.b16 %v947, %v926
    %v1158 = vpack.c.b16 %v948, %v927
    %v1159 = vpack.c.b16 %v949, %v928
    %v1160 = vpack.c.b16 %v950, %v929
    %v1161 = vpack.c.b16 %v951, %v930
    %v1162 = vpack.c.b16 %v952, %v931
    %v1163 = vpack.c.b16 %v953, %v932
    %v1164 = vpack.c.b16 %v954, %v954
    %v1165 = vpack.c.b16 %v955, %v955
    %v1166 = vpack.c.b16 %v956, %v956
    %v1167 = vpack.c.b16 %v957, %v957
    %v1168 = vpack.c.b16 %v958, %v958
    %v1169 = vpack.c.b16 %v959, %v959
    %v1170 = vpack.c.b16 %v960, %v960
    %v1171 = vpack.c.b16 %v961, %v961
    %v1172 = vpack.c.b16 %v962, %v962
    %v1173 = vpack.c.b16 %v963, %v963
    %v1174 = vpack.c.b16 %v964, %v964
    %v1175 = vpack.c.b16 %v965, %v965
    %v1176 = vpack.c.b16 %v966, %v966
    %v1177 = vpack.c.b16 %v967, %v967
    %v1178 = vpack.c.b16 %v968, %v968
    %v1179 = vpack.c.b16 %v969, %v969
    %v1180 = vpack.c.b16 %v970, %v970
    %v1181 = vpack.c.b16 %v971, %v971
    %v1182 = vpack.c.b16 %v972, %v972
    %v1183 = vpack.c.b16 %v973, %v973
    %v1184 = vpack.c.b16 %v974, %v974
    %vm1374 = vcmask 138240
    %v1376 = vsel %vm1374, %v365, 0
    %vm1378 = vcmask 1040384
    %v1379 = vsel 0, 4294967295, 65535
    %v1380 = vsel %vm1378, %v1379, 0
    %v1382 = vand.u32 %v1164, %v1380
    %v1385 = vand.u32 %v1165, %v1380
    %v1388 = vand.u32 %v1166, %v1380
    %v1391 = vand.u32 %v1167, %v1380
    %v1394 = vand.u32 %v1168, %v1380
    %v1397 = vand.u32 %v1169, %v1380
    %v1400 = vand.u32 %v1170, %v1380
    %v1403 = vand.u32 %v1171, %v1380
    %v1406 = vand.u32 %v1172, %v1380
    %v1409 = vand.u32 %v1173, %v1380
    %v1412 = vand.u32 %v1174, %v1380
    %v1415 = vand.u32 %v1175, %v1380
    %v1418 = vand.u32 %v1176, %v1380
    %v1421 = vand.u32 %v1177, %v1380
    %v1424 = vand.u32 %v1178, %v1380
    %v1427 = vand.u32 %v1179, %v1380
    %v1430 = vand.u32 %v1180, %v1380
    %v1433 = vand.u32 %v1181, %v1380
    %v1436 = vand.u32 %v1182, %v1380
    %v1439 = vand.u32 %v1183, %v1380
    %v1442 = vand.u32 %v1184, %v1380
    %1444 = vmatprep.subr.bf16.mxu0 %v976
    %1445 = vmatpush1.bf16.msra.mxu0 %v975
    %1446 = vmatprep.subr.bf16.mxu0 %v997
    %1447 = vmatpush1.bf16.msra.mxu0 %v996
    %1448 = vmatprep.subr.bf16.mxu0 %v1018
    %1449 = vmatpush1.bf16.msra.mxu0 %v1017
    %1450 = vmatprep.subr.bf16.mxu0 %v1039
    %1451 = vmatpush1.bf16.msra.mxu0 %v1038
    %1452 = vmatprep.subr.bf16.mxu0 %v1060
    %1453 = vmatpush1.bf16.msra.mxu0 %v1059
    %1454 = vmatprep.subr.bf16.mxu0 %v1081
    %1455 = vmatpush1.bf16.msra.mxu0 %v1080
    %1456 = vmatprep.subr.bf16.mxu0 %v1102
    %1457 = vmatpush1.bf16.msra.mxu0 %v1101
    %1458 = vmatprep.subr.bf16.mxu0 %v1123
    %1459 = vmatpush1.bf16.msra.mxu0 %v1122
    %1460 = vmatprep.subr.bf16.mxu0 %v1144
    %1461 = vmatpush1.bf16.msra.mxu0 %v1143
    %1462 = vmatprep.subr.bf16.mxu0 %v1385
    %1463 = vmatpush1.bf16.msra.mxu0 %v1382
    %1464 = vmatprep.subr.bf16.mxu0 0
    %1465 = vmatpush1.bf16.msra.mxu0 0
    %1466 = vmatprep.subr.bf16.mxu0 0
    %1467 = vmatpush1.bf16.msra.mxu0 0
    %1468 = vmatprep.subr.bf16.mxu0 0
    %1469 = vmatpush1.bf16.msra.mxu0 0
    %1470 = vmatprep.subr.bf16.mxu0 0
    %1471 = vmatpush1.bf16.msra.mxu0 0
    %1472 = vmatprep.subr.bf16.mxu0 0
    %1473 = vmatpush1.bf16.msra.mxu0 0
    %1474 = vmatprep.subr.bf16.mxu0 0
    %1475 = vmatpush1.bf16.msra.mxu0 0
    %1476 = vmatprep.mubr.bf16.mxu0 %v1376
    %1477 = vmatmul.mubr.bf16.gmra.mrb[0].mxu0 %v364
    %v1478 = vpop.f32.mrb[0].mxu0
    %v1479 = vadd.f32 %v256, %v1478
    %v1480 = vpop.f32.mrb[0].mxu0
    %v1481 = vadd.f32 %v260, %v1480
    %v1482 = vpop.f32.mrb[0].mxu0
    %v1483 = vadd.f32 %v256, %v1482
    %v1484 = vpop.f32.mrb[0].mxu0
    %v1485 = vadd.f32 %v260, %v1484
    %1486 = vdwg.mxu0
    %1487 = vmatprep.subr.bf16.mxu0 %v978
    %1488 = vmatpush1.bf16.msra.mxu0 %v977
    %1489 = vmatprep.subr.bf16.mxu0 %v999
    %1490 = vmatpush1.bf16.msra.mxu0 %v998
    %1491 = vmatprep.subr.bf16.mxu0 %v1020
    %1492 = vmatpush1.bf16.msra.mxu0 %v1019
    %1493 = vmatprep.subr.bf16.mxu0 %v1041
    %1494 = vmatpush1.bf16.msra.mxu0 %v1040
    %1495 = vmatprep.subr.bf16.mxu0 %v1062
    %1496 = vmatpush1.bf16.msra.mxu0 %v1061
    %1497 = vmatprep.subr.bf16.mxu0 %v1083
    %1498 = vmatpush1.bf16.msra.mxu0 %v1082
    %1499 = vmatprep.subr.bf16.mxu0 %v1104
    %1500 = vmatpush1.bf16.msra.mxu0 %v1103
    %1501 = vmatprep.subr.bf16.mxu0 %v1125
    %1502 = vmatpush1.bf16.msra.mxu0 %v1124
    %1503 = vmatprep.subr.bf16.mxu0 %v1146
    %1504 = vmatpush1.bf16.msra.mxu0 %v1145
    %1505 = vmatprep.subr.bf16.mxu0 %v1391
    %1506 = vmatpush1.bf16.msra.mxu0 %v1388
    %1507 = vmatprep.subr.bf16.mxu0 0
    %1508 = vmatpush1.bf16.msra.mxu0 0
    %1509 = vmatprep.subr.bf16.mxu0 0
    %1510 = vmatpush1.bf16.msra.mxu0 0
    %1511 = vmatprep.subr.bf16.mxu0 0
    %1512 = vmatpush1.bf16.msra.mxu0 0
    %1513 = vmatprep.subr.bf16.mxu0 0
    %1514 = vmatpush1.bf16.msra.mxu0 0
    %1515 = vmatprep.subr.bf16.mxu0 0
    %1516 = vmatpush1.bf16.msra.mxu0 0
    %1517 = vmatprep.subr.bf16.mxu0 0
    %1518 = vmatpush1.bf16.msra.mxu0 0
    %1519 = vmatprep.mubr.bf16.mxu0 %v1376
    %1520 = vmatmul.mubr.bf16.gmra.mrb[0].mxu0 %v364
    %v1521 = vpop.f32.mrb[0].mxu0
    %v1522 = vadd.f32 %v264, %v1521
    %v1523 = vpop.f32.mrb[0].mxu0
    %v1524 = vadd.f32 %v268, %v1523
    %v1525 = vpop.f32.mrb[0].mxu0
    %v1526 = vadd.f32 %v264, %v1525
    %v1527 = vpop.f32.mrb[0].mxu0
    %v1528 = vadd.f32 %v268, %v1527
    %1529 = vdwg.mxu0
    %1530 = vmatprep.subr.bf16.mxu0 %v980
    %1531 = vmatpush1.bf16.msra.mxu0 %v979
    %1532 = vmatprep.subr.bf16.mxu0 %v1001
    %1533 = vmatpush1.bf16.msra.mxu0 %v1000
    %1534 = vmatprep.subr.bf16.mxu0 %v1022
    %1535 = vmatpush1.bf16.msra.mxu0 %v1021
    %1536 = vmatprep.subr.bf16.mxu0 %v1043
    %1537 = vmatpush1.bf16.msra.mxu0 %v1042
    %1538 = vmatprep.subr.bf16.mxu0 %v1064
    %1539 = vmatpush1.bf16.msra.mxu0 %v1063
    %1540 = vmatprep.subr.bf16.mxu0 %v1085
    %1541 = vmatpush1.bf16.msra.mxu0 %v1084
    %1542 = vmatprep.subr.bf16.mxu0 %v1106
    %1543 = vmatpush1.bf16.msra.mxu0 %v1105
    %1544 = vmatprep.subr.bf16.mxu0 %v1127
    %1545 = vmatpush1.bf16.msra.mxu0 %v1126
    %1546 = vmatprep.subr.bf16.mxu0 %v1148
    %1547 = vmatpush1.bf16.msra.mxu0 %v1147
    %1548 = vmatprep.subr.bf16.mxu0 %v1397
    %1549 = vmatpush1.bf16.msra.mxu0 %v1394
    %1550 = vmatprep.subr.bf16.mxu0 0
    %1551 = vmatpush1.bf16.msra.mxu0 0
    %1552 = vmatprep.subr.bf16.mxu0 0
    %1553 = vmatpush1.bf16.msra.mxu0 0
    %1554 = vmatprep.subr.bf16.mxu0 0
    %1555 = vmatpush1.bf16.msra.mxu0 0
    %1556 = vmatprep.subr.bf16.mxu0 0
    %1557 = vmatpush1.bf16.msra.mxu0 0
    %1558 = vmatprep.subr.bf16.mxu0 0
    %1559 = vmatpush1.bf16.msra.mxu0 0
    %1560 = vmatprep.subr.bf16.mxu0 0
    %1561 = vmatpush1.bf16.msra.mxu0 0
    %1562 = vmatprep.mubr.bf16.mxu0 %v1376
    %1563 = vmatmul.mubr.bf16.gmra.mrb[0].mxu0 %v364
    %v1564 = vpop.f32.mrb[0].mxu0
    %v1565 = vadd.f32 %v272, %v1564
    %v1566 = vpop.f32.mrb[0].mxu0
    %v1567 = vadd.f32 %v276, %v1566
    %v1568 = vpop.f32.mrb[0].mxu0
    %v1569 = vadd.f32 %v272, %v1568
    %v1570 = vpop.f32.mrb[0].mxu0
    %v1571 = vadd.f32 %v276, %v1570
    %1572 = vdwg.mxu0
    %1573 = vmatprep.subr.bf16.mxu0 %v982
    %1574 = vmatpush1.bf16.msra.mxu0 %v981
    %1575 = vmatprep.subr.bf16.mxu0 %v1003
    %1576 = vmatpush1.bf16.msra.mxu0 %v1002
    %1577 = vmatprep.subr.bf16.mxu0 %v1024
    %1578 = vmatpush1.bf16.msra.mxu0 %v1023
    %1579 = vmatprep.subr.bf16.mxu0 %v1045
    %1580 = vmatpush1.bf16.msra.mxu0 %v1044
    %1581 = vmatprep.subr.bf16.mxu0 %v1066
    %1582 = vmatpush1.bf16.msra.mxu0 %v1065
    %1583 = vmatprep.subr.bf16.mxu0 %v1087
    %1584 = vmatpush1.bf16.msra.mxu0 %v1086
    %1585 = vmatprep.subr.bf16.mxu0 %v1108
    %1586 = vmatpush1.bf16.msra.mxu0 %v1107
    %1587 = vmatprep.subr.bf16.mxu0 %v1129
    %1588 = vmatpush1.bf16.msra.mxu0 %v1128
    %1589 = vmatprep.subr.bf16.mxu0 %v1150
    %1590 = vmatpush1.bf16.msra.mxu0 %v1149
    %1591 = vmatprep.subr.bf16.mxu0 %v1403
    %1592 = vmatpush1.bf16.msra.mxu0 %v1400
    %1593 = vmatprep.subr.bf16.mxu0 0
    %1594 = vmatpush1.bf16.msra.mxu0 0
    %1595 = vmatprep.subr.bf16.mxu0 0
    %1596 = vmatpush1.bf16.msra.mxu0 0
    %1597 = vmatprep.subr.bf16.mxu0 0
    %1598 = vmatpush1.bf16.msra.mxu0 0
    %1599 = vmatprep.subr.bf16.mxu0 0
    %1600 = vmatpush1.bf16.msra.mxu0 0
    %1601 = vmatprep.subr.bf16.mxu0 0
    %1602 = vmatpush1.bf16.msra.mxu0 0
    %1603 = vmatprep.subr.bf16.mxu0 0
    %1604 = vmatpush1.bf16.msra.mxu0 0
    %1605 = vmatprep.mubr.bf16.mxu0 %v1376
    %1606 = vmatmul.mubr.bf16.gmra.mrb[0].mxu0 %v364
    %v1607 = vpop.f32.mrb[0].mxu0
    %v1608 = vadd.f32 %v280, %v1607
    %v1609 = vpop.f32.mrb[0].mxu0
    %v1610 = vadd.f32 %v284, %v1609
    %v1611 = vpop.f32.mrb[0].mxu0
    %v1612 = vadd.f32 %v280, %v1611
    %v1613 = vpop.f32.mrb[0].mxu0
    %v1614 = vadd.f32 %v284, %v1613
    %1615 = vdwg.mxu0
    %1616 = vmatprep.subr.bf16.mxu0 %v984
    %1617 = vmatpush1.bf16.msra.mxu0 %v983
    %1618 = vmatprep.subr.bf16.mxu0 %v1005
    %1619 = vmatpush1.bf16.msra.mxu0 %v1004
    %1620 = vmatprep.subr.bf16.mxu0 %v1026
    %1621 = vmatpush1.bf16.msra.mxu0 %v1025
    %1622 = vmatprep.subr.bf16.mxu0 %v1047
    %1623 = vmatpush1.bf16.msra.mxu0 %v1046
    %1624 = vmatprep.subr.bf16.mxu0 %v1068
    %1625 = vmatpush1.bf16.msra.mxu0 %v1067
    %1626 = vmatprep.subr.bf16.mxu0 %v1089
    %1627 = vmatpush1.bf16.msra.mxu0 %v1088
    %1628 = vmatprep.subr.bf16.mxu0 %v1110
    %1629 = vmatpush1.bf16.msra.mxu0 %v1109
    %1630 = vmatprep.subr.bf16.mxu0 %v1131
    %1631 = vmatpush1.bf16.msra.mxu0 %v1130
    %1632 = vmatprep.subr.bf16.mxu0 %v1152
    %1633 = vmatpush1.bf16.msra.mxu0 %v1151
    %1634 = vmatprep.subr.bf16.mxu0 %v1409
    %1635 = vmatpush1.bf16.msra.mxu0 %v1406
    %1636 = vmatprep.subr.bf16.mxu0 0
    %1637 = vmatpush1.bf16.msra.mxu0 0
    %1638 = vmatprep.subr.bf16.mxu0 0
    %1639 = vmatpush1.bf16.msra.mxu0 0
    %1640 = vmatprep.subr.bf16.mxu0 0
    %1641 = vmatpush1.bf16.msra.mxu0 0
    %1642 = vmatprep.subr.bf16.mxu0 0
    %1643 = vmatpush1.bf16.msra.mxu0 0
    %1644 = vmatprep.subr.bf16.mxu0 0
    %1645 = vmatpush1.bf16.msra.mxu0 0
    %1646 = vmatprep.subr.bf16.mxu0 0
    %1647 = vmatpush1.bf16.msra.mxu0 0
    %1648 = vmatprep.mubr.bf16.mxu0 %v1376
    %1649 = vmatmul.mubr.bf16.gmra.mrb[0].mxu0 %v364
    %v1650 = vpop.f32.mrb[0].mxu0
    %v1651 = vadd.f32 %v288, %v1650
    %v1652 = vpop.f32.mrb[0].mxu0
    %v1653 = vadd.f32 %v292, %v1652
    %v1654 = vpop.f32.mrb[0].mxu0
    %v1655 = vadd.f32 %v288, %v1654
    %v1656 = vpop.f32.mrb[0].mxu0
    %v1657 = vadd.f32 %v292, %v1656
    %1658 = vdwg.mxu0
    %1659 = vmatprep.subr.bf16.mxu0 %v986
    %1660 = vmatpush1.bf16.msra.mxu0 %v985
    %1661 = vmatprep.subr.bf16.mxu0 %v1007
    %1662 = vmatpush1.bf16.msra.mxu0 %v1006
    %1663 = vmatprep.subr.bf16.mxu0 %v1028
    %1664 = vmatpush1.bf16.msra.mxu0 %v1027
    %1665 = vmatprep.subr.bf16.mxu0 %v1049
    %1666 = vmatpush1.bf16.msra.mxu0 %v1048
    %1667 = vmatprep.subr.bf16.mxu0 %v1070
    %1668 = vmatpush1.bf16.msra.mxu0 %v1069
    %1669 = vmatprep.subr.bf16.mxu0 %v1091
    %1670 = vmatpush1.bf16.msra.mxu0 %v1090
    %1671 = vmatprep.subr.bf16.mxu0 %v1112
    %1672 = vmatpush1.bf16.msra.mxu0 %v1111
    %1673 = vmatprep.subr.bf16.mxu0 %v1133
    %1674 = vmatpush1.bf16.msra.mxu0 %v1132
    %1675 = vmatprep.subr.bf16.mxu0 %v1154
    %1676 = vmatpush1.bf16.msra.mxu0 %v1153
    %1677 = vmatprep.subr.bf16.mxu0 %v1415
    %1678 = vmatpush1.bf16.msra.mxu0 %v1412
    %1679 = vmatprep.subr.bf16.mxu0 0
    %1680 = vmatpush1.bf16.msra.mxu0 0
    %1681 = vmatprep.subr.bf16.mxu0 0
    %1682 = vmatpush1.bf16.msra.mxu0 0
    %1683 = vmatprep.subr.bf16.mxu0 0
    %1684 = vmatpush1.bf16.msra.mxu0 0
    %1685 = vmatprep.subr.bf16.mxu0 0
    %1686 = vmatpush1.bf16.msra.mxu0 0
    %1687 = vmatprep.subr.bf16.mxu0 0
    %1688 = vmatpush1.bf16.msra.mxu0 0
    %1689 = vmatprep.subr.bf16.mxu0 0
    %1690 = vmatpush1.bf16.msra.mxu0 0
    %1691 = vmatprep.mubr.bf16.mxu0 %v1376
    %1692 = vmatmul.mubr.bf16.gmra.mrb[0].mxu0 %v364
    %v1693 = vpop.f32.mrb[0].mxu0
    %v1694 = vadd.f32 %v296, %v1693
    %v1695 = vpop.f32.mrb[0].mxu0
    %v1696 = vadd.f32 %v300, %v1695
    %v1697 = vpop.f32.mrb[0].mxu0
    %v1698 = vadd.f32 %v296, %v1697
    %v1699 = vpop.f32.mrb[0].mxu0
    %v1700 = vadd.f32 %v300, %v1699
    %1701 = vdwg.mxu0
    %1702 = vmatprep.subr.bf16.mxu0 %v988
    %1703 = vmatpush1.bf16.msra.mxu0 %v987
    %1704 = vmatprep.subr.bf16.mxu0 %v1009
    %1705 = vmatpush1.bf16.msra.mxu0 %v1008
    %1706 = vmatprep.subr.bf16.mxu0 %v1030
    %1707 = vmatpush1.bf16.msra.mxu0 %v1029
    %1708 = vmatprep.subr.bf16.mxu0 %v1051
    %1709 = vmatpush1.bf16.msra.mxu0 %v1050
    %1710 = vmatprep.subr.bf16.mxu0 %v1072
    %1711 = vmatpush1.bf16.msra.mxu0 %v1071
    %1712 = vmatprep.subr.bf16.mxu0 %v1093
    %1713 = vmatpush1.bf16.msra.mxu0 %v1092
    %1714 = vmatprep.subr.bf16.mxu0 %v1114
    %1715 = vmatpush1.bf16.msra.mxu0 %v1113
    %1716 = vmatprep.subr.bf16.mxu0 %v1135
    %1717 = vmatpush1.bf16.msra.mxu0 %v1134
    %1718 = vmatprep.subr.bf16.mxu0 %v1156
    %1719 = vmatpush1.bf16.msra.mxu0 %v1155
    %1720 = vmatprep.subr.bf16.mxu0 %v1421
    %1721 = vmatpush1.bf16.msra.mxu0 %v1418
    %1722 = vmatprep.subr.bf16.mxu0 0
    %1723 = vmatpush1.bf16.msra.mxu0 0
    %1724 = vmatprep.subr.bf16.mxu0 0
    %1725 = vmatpush1.bf16.msra.mxu0 0
    %1726 = vmatprep.subr.bf16.mxu0 0
    %1727 = vmatpush1.bf16.msra.mxu0 0
    %1728 = vmatprep.subr.bf16.mxu0 0
    %1729 = vmatpush1.bf16.msra.mxu0 0
    %1730 = vmatprep.subr.bf16.mxu0 0
    %1731 = vmatpush1.bf16.msra.mxu0 0
    %1732 = vmatprep.subr.bf16.mxu0 0
    %1733 = vmatpush1.bf16.msra.mxu0 0
    %1734 = vmatprep.mubr.bf16.mxu0 %v1376
    %1735 = vmatmul.mubr.bf16.gmra.mrb[0].mxu0 %v364
    %v1736 = vpop.f32.mrb[0].mxu0
    %v1737 = vadd.f32 %v304, %v1736
    %v1738 = vpop.f32.mrb[0].mxu0
    %v1739 = vadd.f32 %v308, %v1738
    %v1740 = vpop.f32.mrb[0].mxu0
    %v1741 = vadd.f32 %v304, %v1740
    %v1742 = vpop.f32.mrb[0].mxu0
    %v1743 = vadd.f32 %v308, %v1742
    %1744 = vdwg.mxu0
    %1745 = vmatprep.subr.bf16.mxu0 %v990
    %1746 = vmatpush1.bf16.msra.mxu0 %v989
    %1747 = vmatprep.subr.bf16.mxu0 %v1011
    %1748 = vmatpush1.bf16.msra.mxu0 %v1010
    %1749 = vmatprep.subr.bf16.mxu0 %v1032
    %1750 = vmatpush1.bf16.msra.mxu0 %v1031
    %1751 = vmatprep.subr.bf16.mxu0 %v1053
    %1752 = vmatpush1.bf16.msra.mxu0 %v1052
    %1753 = vmatprep.subr.bf16.mxu0 %v1074
    %1754 = vmatpush1.bf16.msra.mxu0 %v1073
    %1755 = vmatprep.subr.bf16.mxu0 %v1095
    %1756 = vmatpush1.bf16.msra.mxu0 %v1094
    %1757 = vmatprep.subr.bf16.mxu0 %v1116
    %1758 = vmatpush1.bf16.msra.mxu0 %v1115
    %1759 = vmatprep.subr.bf16.mxu0 %v1137
    %1760 = vmatpush1.bf16.msra.mxu0 %v1136
    %1761 = vmatprep.subr.bf16.mxu0 %v1158
    %1762 = vmatpush1.bf16.msra.mxu0 %v1157
    %1763 = vmatprep.subr.bf16.mxu0 %v1427
    %1764 = vmatpush1.bf16.msra.mxu0 %v1424
    %1765 = vmatprep.subr.bf16.mxu0 0
    %1766 = vmatpush1.bf16.msra.mxu0 0
    %1767 = vmatprep.subr.bf16.mxu0 0
    %1768 = vmatpush1.bf16.msra.mxu0 0
    %1769 = vmatprep.subr.bf16.mxu0 0
    %1770 = vmatpush1.bf16.msra.mxu0 0
    %1771 = vmatprep.subr.bf16.mxu0 0
    %1772 = vmatpush1.bf16.msra.mxu0 0
    %1773 = vmatprep.subr.bf16.mxu0 0
    %1774 = vmatpush1.bf16.msra.mxu0 0
    %1775 = vmatprep.subr.bf16.mxu0 0
    %1776 = vmatpush1.bf16.msra.mxu0 0
    %1777 = vmatprep.mubr.bf16.mxu0 %v1376
    %1778 = vmatmul.mubr.bf16.gmra.mrb[0].mxu0 %v364
    %v1779 = vpop.f32.mrb[0].mxu0
    %v1780 = vadd.f32 %v312, %v1779
    %v1781 = vpop.f32.mrb[0].mxu0
    %v1782 = vadd.f32 %v316, %v1781
    %v1783 = vpop.f32.mrb[0].mxu0
    %v1784 = vadd.f32 %v312, %v1783
    %v1785 = vpop.f32.mrb[0].mxu0
    %v1786 = vadd.f32 %v316, %v1785
    %1787 = vdwg.mxu0
    %1788 = vmatprep.subr.bf16.mxu0 %v992
    %1789 = vmatpush1.bf16.msra.mxu0 %v991
    %1790 = vmatprep.subr.bf16.mxu0 %v1013
    %1791 = vmatpush1.bf16.msra.mxu0 %v1012
    %1792 = vmatprep.subr.bf16.mxu0 %v1034
    %1793 = vmatpush1.bf16.msra.mxu0 %v1033
    %1794 = vmatprep.subr.bf16.mxu0 %v1055
    %1795 = vmatpush1.bf16.msra.mxu0 %v1054
    %1796 = vmatprep.subr.bf16.mxu0 %v1076
    %1797 = vmatpush1.bf16.msra.mxu0 %v1075
    %1798 = vmatprep.subr.bf16.mxu0 %v1097
    %1799 = vmatpush1.bf16.msra.mxu0 %v1096
    %1800 = vmatprep.subr.bf16.mxu0 %v1118
    %1801 = vmatpush1.bf16.msra.mxu0 %v1117
    %1802 = vmatprep.subr.bf16.mxu0 %v1139
    %1803 = vmatpush1.bf16.msra.mxu0 %v1138
    %1804 = vmatprep.subr.bf16.mxu0 %v1160
    %1805 = vmatpush1.bf16.msra.mxu0 %v1159
    %1806 = vmatprep.subr.bf16.mxu0 %v1433
    %1807 = vmatpush1.bf16.msra.mxu0 %v1430
    %1808 = vmatprep.subr.bf16.mxu0 0
    %1809 = vmatpush1.bf16.msra.mxu0 0
    %1810 = vmatprep.subr.bf16.mxu0 0
    %1811 = vmatpush1.bf16.msra.mxu0 0
    %1812 = vmatprep.subr.bf16.mxu0 0
    %1813 = vmatpush1.bf16.msra.mxu0 0
    %1814 = vmatprep.subr.bf16.mxu0 0
    %1815 = vmatpush1.bf16.msra.mxu0 0
    %1816 = vmatprep.subr.bf16.mxu0 0
    %1817 = vmatpush1.bf16.msra.mxu0 0
    %1818 = vmatprep.subr.bf16.mxu0 0
    %1819 = vmatpush1.bf16.msra.mxu0 0
    %1820 = vmatprep.mubr.bf16.mxu0 %v1376
    %1821 = vmatmul.mubr.bf16.gmra.mrb[0].mxu0 %v364
    %v1822 = vpop.f32.mrb[0].mxu0
    %v1823 = vadd.f32 %v320, %v1822
    %v1824 = vpop.f32.mrb[0].mxu0
    %v1825 = vadd.f32 %v324, %v1824
    %v1826 = vpop.f32.mrb[0].mxu0
    %v1827 = vadd.f32 %v320, %v1826
    %v1828 = vpop.f32.mrb[0].mxu0
    %v1829 = vadd.f32 %v324, %v1828
    %1830 = vdwg.mxu0
    %1831 = vmatprep.subr.bf16.mxu0 %v994
    %1832 = vmatpush1.bf16.msra.mxu0 %v993
    %1833 = vmatprep.subr.bf16.mxu0 %v1015
    %1834 = vmatpush1.bf16.msra.mxu0 %v1014
    %1835 = vmatprep.subr.bf16.mxu0 %v1036
    %1836 = vmatpush1.bf16.msra.mxu0 %v1035
    %1837 = vmatprep.subr.bf16.mxu0 %v1057
    %1838 = vmatpush1.bf16.msra.mxu0 %v1056
    %1839 = vmatprep.subr.bf16.mxu0 %v1078
    %1840 = vmatpush1.bf16.msra.mxu0 %v1077
    %1841 = vmatprep.subr.bf16.mxu0 %v1099
    %1842 = vmatpush1.bf16.msra.mxu0 %v1098
    %1843 = vmatprep.subr.bf16.mxu0 %v1120
    %1844 = vmatpush1.bf16.msra.mxu0 %v1119
    %1845 = vmatprep.subr.bf16.mxu0 %v1141
    %1846 = vmatpush1.bf16.msra.mxu0 %v1140
    %1847 = vmatprep.subr.bf16.mxu0 %v1162
    %1848 = vmatpush1.bf16.msra.mxu0 %v1161
    %1849 = vmatprep.subr.bf16.mxu0 %v1439
    %1850 = vmatpush1.bf16.msra.mxu0 %v1436
    %1851 = vmatprep.subr.bf16.mxu0 0
    %1852 = vmatpush1.bf16.msra.mxu0 0
    %1853 = vmatprep.subr.bf16.mxu0 0
    %1854 = vmatpush1.bf16.msra.mxu0 0
    %1855 = vmatprep.subr.bf16.mxu0 0
    %1856 = vmatpush1.bf16.msra.mxu0 0
    %1857 = vmatprep.subr.bf16.mxu0 0
    %1858 = vmatpush1.bf16.msra.mxu0 0
    %1859 = vmatprep.subr.bf16.mxu0 0
    %1860 = vmatpush1.bf16.msra.mxu0 0
    %1861 = vmatprep.subr.bf16.mxu0 0
    %1862 = vmatpush1.bf16.msra.mxu0 0
    %1863 = vmatprep.mubr.bf16.mxu0 %v1376
    %1864 = vmatmul.mubr.bf16.gmra.mrb[0].mxu0 %v364
    %v1865 = vpop.f32.mrb[0].mxu0
    %v1866 = vadd.f32 %v328, %v1865
    %v1867 = vpop.f32.mrb[0].mxu0
    %v1868 = vadd.f32 %v332, %v1867
    %v1869 = vpop.f32.mrb[0].mxu0
    %v1870 = vadd.f32 %v328, %v1869
    %v1871 = vpop.f32.mrb[0].mxu0
    %v1872 = vadd.f32 %v332, %v1871
    %1873 = vdwg.mxu0
    %1874 = vmatprep.subr.bf16.mxu0 0
    %1875 = vmatpush1.bf16.msra.mxu0 %v995
    %1876 = vmatprep.subr.bf16.mxu0 0
    %1877 = vmatpush1.bf16.msra.mxu0 %v1016
    %1878 = vmatprep.subr.bf16.mxu0 0
    %1879 = vmatpush1.bf16.msra.mxu0 %v1037
    %1880 = vmatprep.subr.bf16.mxu0 0
    %1881 = vmatpush1.bf16.msra.mxu0 %v1058
    %1882 = vmatprep.subr.bf16.mxu0 0
    %1883 = vmatpush1.bf16.msra.mxu0 %v1079
    %1884 = vmatprep.subr.bf16.mxu0 0
    %1885 = vmatpush1.bf16.msra.mxu0 %v1100
    %1886 = vmatprep.subr.bf16.mxu0 0
    %1887 = vmatpush1.bf16.msra.mxu0 %v1121
    %1888 = vmatprep.subr.bf16.mxu0 0
    %1889 = vmatpush1.bf16.msra.mxu0 %v1142
    %1890 = vmatprep.subr.bf16.mxu0 0
    %1891 = vmatpush1.bf16.msra.mxu0 %v1163
    %1892 = vmatprep.subr.bf16.mxu0 0
    %1893 = vmatpush1.bf16.msra.mxu0 %v1442
    %1894 = vmatprep.subr.bf16.mxu0 0
    %1895 = vmatpush1.bf16.msra.mxu0 0
    %1896 = vmatprep.subr.bf16.mxu0 0
    %1897 = vmatpush1.bf16.msra.mxu0 0
    %1898 = vmatprep.subr.bf16.mxu0 0
    %1899 = vmatpush1.bf16.msra.mxu0 0
    %1900 = vmatprep.subr.bf16.mxu0 0
    %1901 = vmatpush1.bf16.msra.mxu0 0
    %1902 = vmatprep.subr.bf16.mxu0 0
    %1903 = vmatpush1.bf16.msra.mxu0 0
    %1904 = vmatprep.subr.bf16.mxu0 0
    %1905 = vmatpush1.bf16.msra.mxu0 0
    %1906 = vmatprep.mubr.bf16.mxu0 %v1376
    %1907 = vmatmul.mubr.bf16.gmra.mrb[0].mxu0 %v364
    %v1908 = vpop.f32.mrb[0].mxu0
    %v1909 = vadd.f32 %v336, %v1908
    %v1910 = vpop.f32.mrb[0].mxu0
    %v1911 = vpop.f32.mrb[0].mxu0
    %v1912 = vadd.f32 %v336, %v1911
    %v1913 = vpop.f32.mrb[0].mxu0
    %1914 = vdwg.mxu0
    %v1915 = vld [vmem:[%s1] sm:$0xf]
    %v1916 = vld [vmem:[%s1 + $0x4] sm:$0xf]
    %v1917 = vld [vmem:[%s1 + $0x8] sm:$0xf]
    %v1918 = vld [vmem:[%s1 + $0xc] sm:$0xf]
    %v1919 = vld [vmem:[%s1 + $0x10] sm:$0xf]
    %v1920 = vld [vmem:[%s1 + $0x14] sm:$0xf]
    %v1921 = vld [vmem:[%s1 + $0x18] sm:$0xf]
    %v1922 = vld [vmem:[%s1 + $0x1c] sm:$0xf]
    %v1923 = vld [vmem:[%s1 + $0x20] sm:$0xf]
    %v1924 = vld [vmem:[%s1 + $0x24] sm:$0xf]
    %v1925 = vld [vmem:[%s1 + $0x28] sm:$0xf]
    %v1926 = vld [vmem:[%s1 + $0x2c] sm:$0xf]
    %v1927 = vld [vmem:[%s1 + $0x30] sm:$0xf]
    %v1928 = vld [vmem:[%s1 + $0x34] sm:$0xf]
    %v1929 = vld [vmem:[%s1 + $0x38] sm:$0xf]
    %v1930 = vld [vmem:[%s1 + $0x3c] sm:$0xf]
    %v1931 = vld [vmem:[%s1 + $0x40] sm:$0xf]
    %v1932 = vld [vmem:[%s1 + $0x44] sm:$0xf]
    %v1933 = vld [vmem:[%s1 + $0x48] sm:$0xf]
    %v1934 = vld [vmem:[%s1 + $0x4c] sm:$0xf]
    %v1935 = vld [vmem:[%s1 + $0x50] sm:$0xf]
    %v1936 = vld [vmem:[%s1 + $0x54] sm:$0xf]
    %v1937 = vld [vmem:[%s1 + $0x58] sm:$0xf]
    %v1938 = vld [vmem:[%s1 + $0x5c] sm:$0xf]
    %v1939 = vld [vmem:[%s4] sm:$0xff]
    %v1940 = vld [vmem:[%s4 + $0x8] sm:$0xff]
    %v1941 = vld [vmem:[%s4 + $0x10] sm:$0xff]
    %v1942 = vld [vmem:[%s4 + $0x18] sm:$0xf]
    %v1943 = vld [vmem:[%s4 + $0x1c] sm:$0xff]
    %v1944 = vld [vmem:[%s4 + $0x24] sm:$0xff]
    %v1945 = vld [vmem:[%s4 + $0x2c] sm:$0xff]
    %v1946 = vld [vmem:[%s4 + $0x34] sm:$0xf]
    %v1955 = vunpack.c.l.b16 %v1915
    %v1956 = vunpack.c.l.b16 %v1916
    %v1957 = vunpack.c.l.b16 %v1917
    %v1958 = vunpack.c.l.b16 %v1918
    %v1959 = vunpack.c.l.b16 %v1919
    %v1960 = vunpack.c.l.b16 %v1920
    %v1961 = vunpack.c.l.b16 %v1921
    %v1962 = vunpack.c.l.b16 %v1922
    %v1963 = vpack.c.b16 %v1956, %v1955
    %v1964 = vpack.c.b16 %v1958, %v1957
    %v1965 = vpack.c.b16 %v1960, %v1959
    %v1966 = vpack.c.b16 %v1962, %v1961
    %v1975 = vunpack.c.l.b16 %v1939
    %v1976 = vunpack.c.h.b16 %v1939
    %v1977 = vunpack.c.l.b16 %v1940
    %v1978 = vunpack.c.h.b16 %v1940
    %v1979 = vunpack.c.l.b16 %v1941
    %v1980 = vunpack.c.h.b16 %v1941
    %v1981 = vunpack.c.l.b16 %v1942
    %v1982 = vunpack.c.l.b16 %v1943
    %v1983 = vunpack.c.h.b16 %v1943
    %v1984 = vunpack.c.l.b16 %v1944
    %v1985 = vunpack.c.h.b16 %v1944
    %v1986 = vunpack.c.l.b16 %v1945
    %v1987 = vunpack.c.h.b16 %v1945
    %v1988 = vunpack.c.l.b16 %v1946
    %v1989 = vpack.c.b16 %v1982, %v1975
    %v1990 = vpack.c.b16 %v1983, %v1976
    %v1991 = vpack.c.b16 %v1984, %v1977
    %v1992 = vpack.c.b16 %v1985, %v1978
    %v1993 = vpack.c.b16 %v1986, %v1979
    %v1994 = vpack.c.b16 %v1987, %v1980
    %v1995 = vpack.c.b16 %v1988, %v1981
    %vm2003 = vcmask 130048
    %v2005 = vsel %vm2003, %v1963, 0
    %v2008 = vsel %vm2003, %v1964, 0
    %v2011 = vsel %vm2003, %v1965, 0
    %v2014 = vsel %vm2003, %v1966, 0
    %2016 = vmatprep.subr.bf16.mxu0 %v1990
    %2017 = vmatpush1.bf16.msra.mxu0 %v1989
    %2018 = vmatprep.subr.bf16.mxu0 0
    %2019 = vmatpush1.bf16.msra.mxu0 0
    %2020 = vmatprep.subr.bf16.mxu0 0
    %2021 = vmatpush1.bf16.msra.mxu0 0
    %2022 = vmatprep.subr.bf16.mxu0 0
    %2023 = vmatpush1.bf16.msra.mxu0 0
    %2024 = vmatprep.subr.bf16.mxu0 0
    %2025 = vmatpush1.bf16.msra.mxu0 0
    %2026 = vmatprep.subr.bf16.mxu0 0
    %2027 = vmatpush1.bf16.msra.mxu0 0
    %2028 = vmatprep.subr.bf16.mxu0 0
    %2029 = vmatpush1.bf16.msra.mxu0 0
    %2030 = vmatprep.subr.bf16.mxu0 0
    %2031 = vmatpush1.bf16.msra.mxu0 0
    %2032 = vmatprep.subr.bf16.mxu0 0
    %2033 = vmatpush1.bf16.msra.mxu0 0
    %2034 = vmatprep.subr.bf16.mxu0 0
    %2035 = vmatpush1.bf16.msra.mxu0 0
    %2036 = vmatprep.subr.bf16.mxu0 0
    %2037 = vmatpush1.bf16.msra.mxu0 0
    %2038 = vmatprep.subr.bf16.mxu0 0
    %2039 = vmatpush1.bf16.msra.mxu0 0
    %2040 = vmatprep.subr.bf16.mxu0 0
    %2041 = vmatpush1.bf16.msra.mxu0 0
    %2042 = vmatprep.subr.bf16.mxu0 0
    %2043 = vmatpush1.bf16.msra.mxu0 0
    %2044 = vmatprep.subr.bf16.mxu0 0
    %2045 = vmatpush1.bf16.msra.mxu0 0
    %2046 = vmatprep.subr.bf16.mxu0 0
    %2047 = vmatpush1.bf16.msra.mxu0 0
    %2048 = vmatprep.mubr.bf16.mxu0 0
    %2049 = vmatmul.mubr.bf16.gmra.mrb[0].mxu0 %v2005
    %v2050 = vpop.f32.mrb[0].mxu0
    %v2051 = vadd.f32 0.0, %v2050
    %v2052 = vpop.f32.mrb[0].mxu0
    %v2053 = vadd.f32 0.0, %v2052
    %v2054 = vpop.f32.mrb[0].mxu0
    %v2055 = vadd.f32 0.0, %v2054
    %v2056 = vpop.f32.mrb[0].mxu0
    %v2057 = vadd.f32 0.0, %v2056
    %2058 = vmatprep.mubr.bf16.mxu0 0
    %2059 = vmatmul.mubr.bf16.gmra.mrb[0].mxu0 %v2008
    %v2060 = vpop.f32.mrb[0].mxu0
    %v2061 = vadd.f32 0.0, %v2060
    %v2062 = vpop.f32.mrb[0].mxu0
    %v2063 = vadd.f32 0.0, %v2062
    %v2064 = vpop.f32.mrb[0].mxu0
    %v2065 = vadd.f32 0.0, %v2064
    %v2066 = vpop.f32.mrb[0].mxu0
    %v2067 = vadd.f32 0.0, %v2066
    %2068 = vmatprep.mubr.bf16.mxu0 0
    %2069 = vmatmul.mubr.bf16.gmra.mrb[0].mxu0 %v2011
    %v2070 = vpop.f32.mrb[0].mxu0
    %v2071 = vadd.f32 0.0, %v2070
    %v2072 = vpop.f32.mrb[0].mxu0
    %v2073 = vadd.f32 0.0, %v2072
    %v2074 = vpop.f32.mrb[0].mxu0
    %v2075 = vadd.f32 0.0, %v2074
    %v2076 = vpop.f32.mrb[0].mxu0
    %v2077 = vadd.f32 0.0, %v2076
    %2078 = vmatprep.mubr.bf16.mxu0 0
    %2079 = vmatmul.mubr.bf16.gmra.mrb[0].mxu0 %v2014
    %v2080 = vpop.f32.mrb[0].mxu0
    %v2081 = vadd.f32 0.0, %v2080
    %v2082 = vpop.f32.mrb[0].mxu0
    %v2083 = vadd.f32 0.0, %v2082
    %v2084 = vpop.f32.mrb[0].mxu0
    %v2085 = vadd.f32 0.0, %v2084
    %v2086 = vpop.f32.mrb[0].mxu0
    %v2087 = vadd.f32 0.0, %v2086
    %2088 = vdwg.mxu0
    %2089 = vmatprep.subr.bf16.mxu0 %v1992
    %2090 = vmatpush1.bf16.msra.mxu0 %v1991
    %2091 = vmatprep.subr.bf16.mxu0 0
    %2092 = vmatpush1.bf16.msra.mxu0 0
    %2093 = vmatprep.subr.bf16.mxu0 0
    %2094 = vmatpush1.bf16.msra.mxu0 0
    %2095 = vmatprep.subr.bf16.mxu0 0
    %2096 = vmatpush1.bf16.msra.mxu0 0
    %2097 = vmatprep.subr.bf16.mxu0 0
    %2098 = vmatpush1.bf16.msra.mxu0 0
    %2099 = vmatprep.subr.bf16.mxu0 0
    %2100 = vmatpush1.bf16.msra.mxu0 0
    %2101 = vmatprep.subr.bf16.mxu0 0
    %2102 = vmatpush1.bf16.msra.mxu0 0
    %2103 = vmatprep.subr.bf16.mxu0 0
    %2104 = vmatpush1.bf16.msra.mxu0 0
    %2105 = vmatprep.subr.bf16.mxu0 0
    %2106 = vmatpush1.bf16.msra.mxu0 0
    %2107 = vmatprep.subr.bf16.mxu0 0
    %2108 = vmatpush1.bf16.msra.mxu0 0
    %2109 = vmatprep.subr.bf16.mxu0 0
    %2110 = vmatpush1.bf16.msra.mxu0 0
    %2111 = vmatprep.subr.bf16.mxu0 0
    %2112 = vmatpush1.bf16.msra.mxu0 0
    %2113 = vmatprep.subr.bf16.mxu0 0
    %2114 = vmatpush1.bf16.msra.mxu0 0
    %2115 = vmatprep.subr.bf16.mxu0 0
    %2116 = vmatpush1.bf16.msra.mxu0 0
    %2117 = vmatprep.subr.bf16.mxu0 0
    %2118 = vmatpush1.bf16.msra.mxu0 0
    %2119 = vmatprep.subr.bf16.mxu0 0
    %2120 = vmatpush1.bf16.msra.mxu0 0
    %2121 = vmatprep.mubr.bf16.mxu0 0
    %2122 = vmatmul.mubr.bf16.gmra.mrb[0].mxu0 %v2005
    %v2123 = vpop.f32.mrb[0].mxu0
    %v2124 = vadd.f32 0.0, %v2123
    %v2125 = vpop.f32.mrb[0].mxu0
    %v2126 = vadd.f32 0.0, %v2125
    %v2127 = vpop.f32.mrb[0].mxu0
    %v2128 = vadd.f32 0.0, %v2127
    %v2129 = vpop.f32.mrb[0].mxu0
    %v2130 = vadd.f32 0.0, %v2129
    %2131 = vmatprep.mubr.bf16.mxu0 0
    %2132 = vmatmul.mubr.bf16.gmra.mrb[0].mxu0 %v2008
    %v2133 = vpop.f32.mrb[0].mxu0
    %v2134 = vadd.f32 0.0, %v2133
    %v2135 = vpop.f32.mrb[0].mxu0
    %v2136 = vadd.f32 0.0, %v2135
    %v2137 = vpop.f32.mrb[0].mxu0
    %v2138 = vadd.f32 0.0, %v2137
    %v2139 = vpop.f32.mrb[0].mxu0
    %v2140 = vadd.f32 0.0, %v2139
    %2141 = vmatprep.mubr.bf16.mxu0 0
    %2142 = vmatmul.mubr.bf16.gmra.mrb[0].mxu0 %v2011
    %v2143 = vpop.f32.mrb[0].mxu0
    %v2144 = vadd.f32 0.0, %v2143
    %v2145 = vpop.f32.mrb[0].mxu0
    %v2146 = vadd.f32 0.0, %v2145
    %v2147 = vpop.f32.mrb[0].mxu0
    %v2148 = vadd.f32 0.0, %v2147
    %v2149 = vpop.f32.mrb[0].mxu0
    %v2150 = vadd.f32 0.0, %v2149
    %2151 = vmatprep.mubr.bf16.mxu0 0
    %2152 = vmatmul.mubr.bf16.gmra.mrb[0].mxu0 %v2014
    %v2153 = vpop.f32.mrb[0].mxu0
    %v2154 = vadd.f32 0.0, %v2153
    %v2155 = vpop.f32.mrb[0].mxu0
    %v2156 = vadd.f32 0.0, %v2155
    %v2157 = vpop.f32.mrb[0].mxu0
    %v2158 = vadd.f32 0.0, %v2157
    %v2159 = vpop.f32.mrb[0].mxu0
    %v2160 = vadd.f32 0.0, %v2159
    %2161 = vdwg.mxu0
    %2162 = vmatprep.subr.bf16.mxu0 %v1994
    %2163 = vmatpush1.bf16.msra.mxu0 %v1993
    %2164 = vmatprep.subr.bf16.mxu0 0
    %2165 = vmatpush1.bf16.msra.mxu0 0
    %2166 = vmatprep.subr.bf16.mxu0 0
    %2167 = vmatpush1.bf16.msra.mxu0 0
    %2168 = vmatprep.subr.bf16.mxu0 0
    %2169 = vmatpush1.bf16.msra.mxu0 0
    %2170 = vmatprep.subr.bf16.mxu0 0
    %2171 = vmatpush1.bf16.msra.mxu0 0
    %2172 = vmatprep.subr.bf16.mxu0 0
    %2173 = vmatpush1.bf16.msra.mxu0 0
    %2174 = vmatprep.subr.bf16.mxu0 0
    %2175 = vmatpush1.bf16.msra.mxu0 0
    %2176 = vmatprep.subr.bf16.mxu0 0
    %2177 = vmatpush1.bf16.msra.mxu0 0
    %2178 = vmatprep.subr.bf16.mxu0 0
    %2179 = vmatpush1.bf16.msra.mxu0 0
    %2180 = vmatprep.subr.bf16.mxu0 0
    %2181 = vmatpush1.bf16.msra.mxu0 0
    %2182 = vmatprep.subr.bf16.mxu0 0
    %2183 = vmatpush1.bf16.msra.mxu0 0
    %2184 = vmatprep.subr.bf16.mxu0 0
    %2185 = vmatpush1.bf16.msra.mxu0 0
    %2186 = vmatprep.subr.bf16.mxu0 0
    %2187 = vmatpush1.bf16.msra.mxu0 0
    %2188 = vmatprep.subr.bf16.mxu0 0
    %2189 = vmatpush1.bf16.msra.mxu0 0
    %2190 = vmatprep.subr.bf16.mxu0 0
    %2191 = vmatpush1.bf16.msra.mxu0 0
    %2192 = vmatprep.subr.bf16.mxu0 0
    %2193 = vmatpush1.bf16.msra.mxu0 0
    %2194 = vmatprep.mubr.bf16.mxu0 0
    %2195 = vmatmul.mubr.bf16.gmra.mrb[0].mxu0 %v2005
    %v2196 = vpop.f32.mrb[0].mxu0
    %v2197 = vadd.f32 0.0, %v2196
    %v2198 = vpop.f32.mrb[0].mxu0
    %v2199 = vadd.f32 0.0, %v2198
    %v2200 = vpop.f32.mrb[0].mxu0
    %v2201 = vadd.f32 0.0, %v2200
    %v2202 = vpop.f32.mrb[0].mxu0
    %v2203 = vadd.f32 0.0, %v2202
    %2204 = vmatprep.mubr.bf16.mxu0 0
    %2205 = vmatmul.mubr.bf16.gmra.mrb[0].mxu0 %v2008
    %v2206 = vpop.f32.mrb[0].mxu0
    %v2207 = vadd.f32 0.0, %v2206
    %v2208 = vpop.f32.mrb[0].mxu0
    %v2209 = vadd.f32 0.0, %v2208
    %v2210 = vpop.f32.mrb[0].mxu0
    %v2211 = vadd.f32 0.0, %v2210
    %v2212 = vpop.f32.mrb[0].mxu0
    %v2213 = vadd.f32 0.0, %v2212
    %2214 = vmatprep.mubr.bf16.mxu0 0
    %2215 = vmatmul.mubr.bf16.gmra.mrb[0].mxu0 %v2011
    %v2216 = vpop.f32.mrb[0].mxu0
    %v2217 = vadd.f32 0.0, %v2216
    %v2218 = vpop.f32.mrb[0].mxu0
    %v2219 = vadd.f32 0.0, %v2218
    %v2220 = vpop.f32.mrb[0].mxu0
    %v2221 = vadd.f32 0.0, %v2220
    %v2222 = vpop.f32.mrb[0].mxu0
    %v2223 = vadd.f32 0.0, %v2222
    %2224 = vmatprep.mubr.bf16.mxu0 0
    %2225 = vmatmul.mubr.bf16.gmra.mrb[0].mxu0 %v2014
    %v2226 = vpop.f32.mrb[0].mxu0
    %v2227 = vadd.f32 0.0, %v2226
    %v2228 = vpop.f32.mrb[0].mxu0
    %v2229 = vadd.f32 0.0, %v2228
    %v2230 = vpop.f32.mrb[0].mxu0
    %v2231 = vadd.f32 0.0, %v2230
    %v2232 = vpop.f32.mrb[0].mxu0
    %v2233 = vadd.f32 0.0, %v2232
    %2234 = vdwg.mxu0
    %2235 = vmatprep.subr.bf16.mxu0 0
    %2236 = vmatpush1.bf16.msra.mxu0 %v1995
    %2237 = vmatprep.subr.bf16.mxu0 0
    %2238 = vmatpush1.bf16.msra.mxu0 0
    %2239 = vmatprep.subr.bf16.mxu0 0
    %2240 = vmatpush1.bf16.msra.mxu0 0
    %2241 = vmatprep.subr.bf16.mxu0 0
    %2242 = vmatpush1.bf16.msra.mxu0 0
    %2243 = vmatprep.subr.bf16.mxu0 0
    %2244 = vmatpush1.bf16.msra.mxu0 0
    %2245 = vmatprep.subr.bf16.mxu0 0
    %2246 = vmatpush1.bf16.msra.mxu0 0
    %2247 = vmatprep.subr.bf16.mxu0 0
    %2248 = vmatpush1.bf16.msra.mxu0 0
    %2249 = vmatprep.subr.bf16.mxu0 0
    %2250 = vmatpush1.bf16.msra.mxu0 0
    %2251 = vmatprep.subr.bf16.mxu0 0
    %2252 = vmatpush1.bf16.msra.mxu0 0
    %2253 = vmatprep.subr.bf16.mxu0 0
    %2254 = vmatpush1.bf16.msra.mxu0 0
    %2255 = vmatprep.subr.bf16.mxu0 0
    %2256 = vmatpush1.bf16.msra.mxu0 0
    %2257 = vmatprep.subr.bf16.mxu0 0
    %2258 = vmatpush1.bf16.msra.mxu0 0
    %2259 = vmatprep.subr.bf16.mxu0 0
    %2260 = vmatpush1.bf16.msra.mxu0 0
    %2261 = vmatprep.subr.bf16.mxu0 0
    %2262 = vmatpush1.bf16.msra.mxu0 0
    %2263 = vmatprep.subr.bf16.mxu0 0
    %2264 = vmatpush1.bf16.msra.mxu0 0
    %2265 = vmatprep.subr.bf16.mxu0 0
    %2266 = vmatpush1.bf16.msra.mxu0 0
    %2267 = vmatprep.mubr.bf16.mxu0 0
    %2268 = vmatmul.mubr.bf16.gmra.mrb[0].mxu0 %v2005
    %v2269 = vpop.f32.mrb[0].mxu0
    %v2270 = vadd.f32 0.0, %v2269
    %v2271 = vpop.f32.mrb[0].mxu0
    %v2272 = vpop.f32.mrb[0].mxu0
    %v2273 = vadd.f32 0.0, %v2272
    %v2274 = vpop.f32.mrb[0].mxu0
    %2275 = vmatprep.mubr.bf16.mxu0 0
    %2276 = vmatmul.mubr.bf16.gmra.mrb[0].mxu0 %v2008
    %v2277 = vpop.f32.mrb[0].mxu0
    %v2278 = vadd.f32 0.0, %v2277
    %v2279 = vpop.f32.mrb[0].mxu0
    %v2280 = vpop.f32.mrb[0].mxu0
    %v2281 = vadd.f32 0.0, %v2280
    %v2282 = vpop.f32.mrb[0].mxu0
    %2283 = vmatprep.mubr.bf16.mxu0 0
    %2284 = vmatmul.mubr.bf16.gmra.mrb[0].mxu0 %v2011
    %v2285 = vpop.f32.mrb[0].mxu0
    %v2286 = vadd.f32 0.0, %v2285
    %v2287 = vpop.f32.mrb[0].mxu0
    %v2288 = vpop.f32.mrb[0].mxu0
    %v2289 = vadd.f32 0.0, %v2288
    %v2290 = vpop.f32.mrb[0].mxu0
    %2291 = vmatprep.mubr.bf16.mxu0 0
    %2292 = vmatmul.mubr.bf16.gmra.mrb[0].mxu0 %v2014
    %v2293 = vpop.f32.mrb[0].mxu0
    %v2294 = vadd.f32 0.0, %v2293
    %v2295 = vpop.f32.mrb[0].mxu0
    %v2296 = vpop.f32.mrb[0].mxu0
    %v2297 = vadd.f32 0.0, %v2296
    %v2298 = vpop.f32.mrb[0].mxu0
    %2299 = vdwg.mxu0
    %v2300 = vmul.f32 %v2051, %v1479
    %v2301 = vmul.f32 %v2053, %v1481
    %v2302 = vmul.f32 %v2124, %v1522
    %v2303 = vmul.f32 %v2126, %v1524
    %v2304 = vmul.f32 %v2197, %v1565
    %v2305 = vmul.f32 %v2199, %v1567
    %v2306 = vmul.f32 %v2270, %v1608
    %v2307 = vmul.f32 %v2055, %v1483
    %v2308 = vmul.f32 %v2057, %v1485
    %v2309 = vmul.f32 %v2128, %v1526
    %v2310 = vmul.f32 %v2130, %v1528
    %v2311 = vmul.f32 %v2201, %v1569
    %v2312 = vmul.f32 %v2203, %v1571
    %v2313 = vmul.f32 %v2273, %v1612
    %v2314 = vadd.f32 %v2081, %v2300
    %v2315 = vadd.f32 %v2083, %v2301
    %v2316 = vadd.f32 %v2154, %v2302
    %v2317 = vadd.f32 %v2156, %v2303
    %v2318 = vadd.f32 %v2227, %v2304
    %v2319 = vadd.f32 %v2229, %v2305
    %v2320 = vadd.f32 %v2294, %v2306
    %v2321 = vadd.f32 %v2085, %v2307
    %v2322 = vadd.f32 %v2087, %v2308
    %v2323 = vadd.f32 %v2158, %v2309
    %v2324 = vadd.f32 %v2160, %v2310
    %v2325 = vadd.f32 %v2231, %v2311
    %v2326 = vadd.f32 %v2233, %v2312
    %v2327 = vadd.f32 %v2297, %v2313
    %v2328 = vmul.f32 %v2061, %v1610
    %v2329 = vmul.f32 %v2063, %v1651
    %v2330 = vmul.f32 %v2134, %v1653
    %v2331 = vmul.f32 %v2136, %v1694
    %v2332 = vmul.f32 %v2207, %v1696
    %v2333 = vmul.f32 %v2209, %v1737
    %v2334 = vmul.f32 %v2278, %v1739
    %v2335 = vmul.f32 %v2065, %v1614
    %v2336 = vmul.f32 %v2067, %v1655
    %v2337 = vmul.f32 %v2138, %v1657
    %v2338 = vmul.f32 %v2140, %v1698
    %v2339 = vmul.f32 %v2211, %v1700
    %v2340 = vmul.f32 %v2213, %v1741
    %v2341 = vmul.f32 %v2281, %v1743
    %v2342 = vadd.f32 %v2314, %v2328
    %v2343 = vadd.f32 %v2315, %v2329
    %v2344 = vadd.f32 %v2316, %v2330
    %v2345 = vadd.f32 %v2317, %v2331
    %v2346 = vadd.f32 %v2318, %v2332
    %v2347 = vadd.f32 %v2319, %v2333
    %v2348 = vadd.f32 %v2320, %v2334
    %v2349 = vadd.f32 %v2321, %v2335
    %v2350 = vadd.f32 %v2322, %v2336
    %v2351 = vadd.f32 %v2323, %v2337
    %v2352 = vadd.f32 %v2324, %v2338
    %v2353 = vadd.f32 %v2325, %v2339
    %v2354 = vadd.f32 %v2326, %v2340
    %v2355 = vadd.f32 %v2327, %v2341
    %v2356 = vmul.f32 %v2071, %v1780
    %v2357 = vmul.f32 %v2073, %v1782
    %v2358 = vmul.f32 %v2144, %v1823
    %v2359 = vmul.f32 %v2146, %v1825
    %v2360 = vmul.f32 %v2217, %v1866
    %v2361 = vmul.f32 %v2219, %v1868
    %v2362 = vmul.f32 %v2286, %v1909
    %v2363 = vmul.f32 %v2075, %v1784
    %v2364 = vmul.f32 %v2077, %v1786
    %v2365 = vmul.f32 %v2148, %v1827
    %v2366 = vmul.f32 %v2150, %v1829
    %v2367 = vmul.f32 %v2221, %v1870
    %v2368 = vmul.f32 %v2223, %v1872
    %v2369 = vmul.f32 %v2289, %v1912
    %v2370 = vadd.f32 %v2342, %v2356
    %v2371 = vadd.f32 %v2343, %v2357
    %v2372 = vadd.f32 %v2344, %v2358
    %v2373 = vadd.f32 %v2345, %v2359
    %v2374 = vadd.f32 %v2346, %v2360
    %v2375 = vadd.f32 %v2347, %v2361
    %v2376 = vadd.f32 %v2348, %v2362
    %v2377 = vadd.f32 %v2349, %v2363
    %v2378 = vadd.f32 %v2350, %v2364
    %v2379 = vadd.f32 %v2351, %v2365
    %v2380 = vadd.f32 %v2352, %v2366
    %v2381 = vadd.f32 %v2353, %v2367
    %v2382 = vadd.f32 %v2354, %v2368
    %v2383 = vadd.f32 %v2355, %v2369
    %2384 = vst [vmem:[#allocation5] sm:$0xff] %v2370
    %2385 = vst [vmem:[#allocation5 + $0x8] sm:$0xff] %v2371
    %2386 = vst [vmem:[#allocation5 + $0x10] sm:$0xff] %v2372
    %2387 = vst [vmem:[#allocation5 + $0x18] sm:$0xff] %v2373
    %2388 = vst [vmem:[#allocation5 + $0x20] sm:$0xff] %v2374
    %2389 = vst [vmem:[#allocation5 + $0x28] sm:$0xff] %v2375
    %2390 = vst [vmem:[#allocation5 + $0x30] sm:$0xff] %v2376
    %2391 = vst [vmem:[#allocation5 + $0xa8] sm:$0xff] %v2377
    %2392 = vst [vmem:[#allocation5 + $0xb0] sm:$0xff] %v2378
    %2393 = vst [vmem:[#allocation5 + $0xb8] sm:$0xff] %v2379
    %2394 = vst [vmem:[#allocation5 + $0xc0] sm:$0xff] %v2380
    %2395 = vst [vmem:[#allocation5 + $0xc8] sm:$0xff] %v2381
    %2396 = vst [vmem:[#allocation5 + $0xd0] sm:$0xff] %v2382
    %2397 = vst [vmem:[#allocation5 + $0xd8] sm:$0xff] %v2383
    %v2406 = vunpack.c.l.b16 %v1923
    %v2407 = vunpack.c.l.b16 %v1924
    %v2408 = vunpack.c.l.b16 %v1925
    %v2409 = vunpack.c.l.b16 %v1926
    %v2410 = vunpack.c.l.b16 %v1927
    %v2411 = vunpack.c.l.b16 %v1928
    %v2412 = vunpack.c.l.b16 %v1929
    %v2413 = vunpack.c.l.b16 %v1930
    %v2414 = vpack.c.b16 %v2407, %v2406
    %v2415 = vpack.c.b16 %v2409, %v2408
    %v2416 = vpack.c.b16 %v2411, %v2410
    %v2417 = vpack.c.b16 %v2413, %v2412
    %v2419 = vsel %vm2003, %v2414, 0
    %v2422 = vsel %vm2003, %v2415, 0
    %v2425 = vsel %vm2003, %v2416, 0
    %v2428 = vsel %vm2003, %v2417, 0
    %2430 = vmatprep.subr.bf16.mxu0 %v1990
    %2431 = vmatpush1.bf16.msra.mxu0 %v1989
    %2432 = vmatprep.subr.bf16.mxu0 0
    %2433 = vmatpush1.bf16.msra.mxu0 0
    %2434 = vmatprep.subr.bf16.mxu0 0
    %2435 = vmatpush1.bf16.msra.mxu0 0
    %2436 = vmatprep.subr.bf16.mxu0 0
    %2437 = vmatpush1.bf16.msra.mxu0 0
    %2438 = vmatprep.subr.bf16.mxu0 0
    %2439 = vmatpush1.bf16.msra.mxu0 0
    %2440 = vmatprep.subr.bf16.mxu0 0
    %2441 = vmatpush1.bf16.msra.mxu0 0
    %2442 = vmatprep.subr.bf16.mxu0 0
    %2443 = vmatpush1.bf16.msra.mxu0 0
    %2444 = vmatprep.subr.bf16.mxu0 0
    %2445 = vmatpush1.bf16.msra.mxu0 0
    %2446 = vmatprep.subr.bf16.mxu0 0
    %2447 = vmatpush1.bf16.msra.mxu0 0
    %2448 = vmatprep.subr.bf16.mxu0 0
    %2449 = vmatpush1.bf16.msra.mxu0 0
    %2450 = vmatprep.subr.bf16.mxu0 0
    %2451 = vmatpush1.bf16.msra.mxu0 0
    %2452 = vmatprep.subr.bf16.mxu0 0
    %2453 = vmatpush1.bf16.msra.mxu0 0
    %2454 = vmatprep.subr.bf16.mxu0 0
    %2455 = vmatpush1.bf16.msra.mxu0 0
    %2456 = vmatprep.subr.bf16.mxu0 0
    %2457 = vmatpush1.bf16.msra.mxu0 0
    %2458 = vmatprep.subr.bf16.mxu0 0
    %2459 = vmatpush1.bf16.msra.mxu0 0
    %2460 = vmatprep.subr.bf16.mxu0 0
    %2461 = vmatpush1.bf16.msra.mxu0 0
    %2462 = vmatprep.mubr.bf16.mxu0 0
    %2463 = vmatmul.mubr.bf16.gmra.mrb[0].mxu0 %v2419
    %v2464 = vpop.f32.mrb[0].mxu0
    %v2465 = vadd.f32 0.0, %v2464
    %v2466 = vpop.f32.mrb[0].mxu0
    %v2467 = vadd.f32 0.0, %v2466
    %v2468 = vpop.f32.mrb[0].mxu0
    %v2469 = vadd.f32 0.0, %v2468
    %v2470 = vpop.f32.mrb[0].mxu0
    %v2471 = vadd.f32 0.0, %v2470
    %2472 = vmatprep.mubr.bf16.mxu0 0
    %2473 = vmatmul.mubr.bf16.gmra.mrb[0].mxu0 %v2422
    %v2474 = vpop.f32.mrb[0].mxu0
    %v2475 = vadd.f32 0.0, %v2474
    %v2476 = vpop.f32.mrb[0].mxu0
    %v2477 = vadd.f32 0.0, %v2476
    %v2478 = vpop.f32.mrb[0].mxu0
    %v2479 = vadd.f32 0.0, %v2478
    %v2480 = vpop.f32.mrb[0].mxu0
    %v2481 = vadd.f32 0.0, %v2480
    %2482 = vmatprep.mubr.bf16.mxu0 0
    %2483 = vmatmul.mubr.bf16.gmra.mrb[0].mxu0 %v2425
    %v2484 = vpop.f32.mrb[0].mxu0
    %v2485 = vadd.f32 0.0, %v2484
    %v2486 = vpop.f32.mrb[0].mxu0
    %v2487 = vadd.f32 0.0, %v2486
    %v2488 = vpop.f32.mrb[0].mxu0
    %v2489 = vadd.f32 0.0, %v2488
    %v2490 = vpop.f32.mrb[0].mxu0
    %v2491 = vadd.f32 0.0, %v2490
    %2492 = vmatprep.mubr.bf16.mxu0 0
    %2493 = vmatmul.mubr.bf16.gmra.mrb[0].mxu0 %v2428
    %v2494 = vpop.f32.mrb[0].mxu0
    %v2495 = vadd.f32 0.0, %v2494
    %v2496 = vpop.f32.mrb[0].mxu0
    %v2497 = vadd.f32 0.0, %v2496
    %v2498 = vpop.f32.mrb[0].mxu0
    %v2499 = vadd.f32 0.0, %v2498
    %v2500 = vpop.f32.mrb[0].mxu0
    %v2501 = vadd.f32 0.0, %v2500
    %2502 = vdwg.mxu0
    %2503 = vmatprep.subr.bf16.mxu0 %v1992
    %2504 = vmatpush1.bf16.msra.mxu0 %v1991
    %2505 = vmatprep.subr.bf16.mxu0 0
    %2506 = vmatpush1.bf16.msra.mxu0 0
    %2507 = vmatprep.subr.bf16.mxu0 0
    %2508 = vmatpush1.bf16.msra.mxu0 0
    %2509 = vmatprep.subr.bf16.mxu0 0
    %2510 = vmatpush1.bf16.msra.mxu0 0
    %2511 = vmatprep.subr.bf16.mxu0 0
    %2512 = vmatpush1.bf16.msra.mxu0 0
    %2513 = vmatprep.subr.bf16.mxu0 0
    %2514 = vmatpush1.bf16.msra.mxu0 0
    %2515 = vmatprep.subr.bf16.mxu0 0
    %2516 = vmatpush1.bf16.msra.mxu0 0
    %2517 = vmatprep.subr.bf16.mxu0 0
    %2518 = vmatpush1.bf16.msra.mxu0 0
    %2519 = vmatprep.subr.bf16.mxu0 0
    %2520 = vmatpush1.bf16.msra.mxu0 0
    %2521 = vmatprep.subr.bf16.mxu0 0
    %2522 = vmatpush1.bf16.msra.mxu0 0
    %2523 = vmatprep.subr.bf16.mxu0 0
    %2524 = vmatpush1.bf16.msra.mxu0 0
    %2525 = vmatprep.subr.bf16.mxu0 0
    %2526 = vmatpush1.bf16.msra.mxu0 0
    %2527 = vmatprep.subr.bf16.mxu0 0
    %2528 = vmatpush1.bf16.msra.mxu0 0
    %2529 = vmatprep.subr.bf16.mxu0 0
    %2530 = vmatpush1.bf16.msra.mxu0 0
    %2531 = vmatprep.subr.bf16.mxu0 0
    %2532 = vmatpush1.bf16.msra.mxu0 0
    %2533 = vmatprep.subr.bf16.mxu0 0
    %2534 = vmatpush1.bf16.msra.mxu0 0
    %2535 = vmatprep.mubr.bf16.mxu0 0
    %2536 = vmatmul.mubr.bf16.gmra.mrb[0].mxu0 %v2419
    %v2537 = vpop.f32.mrb[0].mxu0
    %v2538 = vadd.f32 0.0, %v2537
    %v2539 = vpop.f32.mrb[0].mxu0
    %v2540 = vadd.f32 0.0, %v2539
    %v2541 = vpop.f32.mrb[0].mxu0
    %v2542 = vadd.f32 0.0, %v2541
    %v2543 = vpop.f32.mrb[0].mxu0
    %v2544 = vadd.f32 0.0, %v2543
    %2545 = vmatprep.mubr.bf16.mxu0 0
    %2546 = vmatmul.mubr.bf16.gmra.mrb[0].mxu0 %v2422
    %v2547 = vpop.f32.mrb[0].mxu0
    %v2548 = vadd.f32 0.0, %v2547
    %v2549 = vpop.f32.mrb[0].mxu0
    %v2550 = vadd.f32 0.0, %v2549
    %v2551 = vpop.f32.mrb[0].mxu0
    %v2552 = vadd.f32 0.0, %v2551
    %v2553 = vpop.f32.mrb[0].mxu0
    %v2554 = vadd.f32 0.0, %v2553
    %2555 = vmatprep.mubr.bf16.mxu0 0
    %2556 = vmatmul.mubr.bf16.gmra.mrb[0].mxu0 %v2425
    %v2557 = vpop.f32.mrb[0].mxu0
    %v2558 = vadd.f32 0.0, %v2557
    %v2559 = vpop.f32.mrb[0].mxu0
    %v2560 = vadd.f32 0.0, %v2559
    %v2561 = vpop.f32.mrb[0].mxu0
    %v2562 = vadd.f32 0.0, %v2561
    %v2563 = vpop.f32.mrb[0].mxu0
    %v2564 = vadd.f32 0.0, %v2563
    %2565 = vmatprep.mubr.bf16.mxu0 0
    %2566 = vmatmul.mubr.bf16.gmra.mrb[0].mxu0 %v2428
    %v2567 = vpop.f32.mrb[0].mxu0
    %v2568 = vadd.f32 0.0, %v2567
    %v2569 = vpop.f32.mrb[0].mxu0
    %v2570 = vadd.f32 0.0, %v2569
    %v2571 = vpop.f32.mrb[0].mxu0
    %v2572 = vadd.f32 0.0, %v2571
    %v2573 = vpop.f32.mrb[0].mxu0
    %v2574 = vadd.f32 0.0, %v2573
    %2575 = vdwg.mxu0
    %2576 = vmatprep.subr.bf16.mxu0 %v1994
    %2577 = vmatpush1.bf16.msra.mxu0 %v1993
    %2578 = vmatprep.subr.bf16.mxu0 0
    %2579 = vmatpush1.bf16.msra.mxu0 0
    %2580 = vmatprep.subr.bf16.mxu0 0
    %2581 = vmatpush1.bf16.msra.mxu0 0
    %2582 = vmatprep.subr.bf16.mxu0 0
    %2583 = vmatpush1.bf16.msra.mxu0 0
    %2584 = vmatprep.subr.bf16.mxu0 0
    %2585 = vmatpush1.bf16.msra.mxu0 0
    %2586 = vmatprep.subr.bf16.mxu0 0
    %2587 = vmatpush1.bf16.msra.mxu0 0
    %2588 = vmatprep.subr.bf16.mxu0 0
    %2589 = vmatpush1.bf16.msra.mxu0 0
    %2590 = vmatprep.subr.bf16.mxu0 0
    %2591 = vmatpush1.bf16.msra.mxu0 0
    %2592 = vmatprep.subr.bf16.mxu0 0
    %2593 = vmatpush1.bf16.msra.mxu0 0
    %2594 = vmatprep.subr.bf16.mxu0 0
    %2595 = vmatpush1.bf16.msra.mxu0 0
    %2596 = vmatprep.subr.bf16.mxu0 0
    %2597 = vmatpush1.bf16.msra.mxu0 0
    %2598 = vmatprep.subr.bf16.mxu0 0
    %2599 = vmatpush1.bf16.msra.mxu0 0
    %2600 = vmatprep.subr.bf16.mxu0 0
    %2601 = vmatpush1.bf16.msra.mxu0 0
    %2602 = vmatprep.subr.bf16.mxu0 0
    %2603 = vmatpush1.bf16.msra.mxu0 0
    %2604 = vmatprep.subr.bf16.mxu0 0
    %2605 = vmatpush1.bf16.msra.mxu0 0
    %2606 = vmatprep.subr.bf16.mxu0 0
    %2607 = vmatpush1.bf16.msra.mxu0 0
    %2608 = vmatprep.mubr.bf16.mxu0 0
    %2609 = vmatmul.mubr.bf16.gmra.mrb[0].mxu0 %v2419
    %v2610 = vpop.f32.mrb[0].mxu0
    %v2611 = vadd.f32 0.0, %v2610
    %v2612 = vpop.f32.mrb[0].mxu0
    %v2613 = vadd.f32 0.0, %v2612
    %v2614 = vpop.f32.mrb[0].mxu0
    %v2615 = vadd.f32 0.0, %v2614
    %v2616 = vpop.f32.mrb[0].mxu0
    %v2617 = vadd.f32 0.0, %v2616
    %2618 = vmatprep.mubr.bf16.mxu0 0
    %2619 = vmatmul.mubr.bf16.gmra.mrb[0].mxu0 %v2422
    %v2620 = vpop.f32.mrb[0].mxu0
    %v2621 = vadd.f32 0.0, %v2620
    %v2622 = vpop.f32.mrb[0].mxu0
    %v2623 = vadd.f32 0.0, %v2622
    %v2624 = vpop.f32.mrb[0].mxu0
    %v2625 = vadd.f32 0.0, %v2624
    %v2626 = vpop.f32.mrb[0].mxu0
    %v2627 = vadd.f32 0.0, %v2626
    %2628 = vmatprep.mubr.bf16.mxu0 0
    %2629 = vmatmul.mubr.bf16.gmra.mrb[0].mxu0 %v2425
    %v2630 = vpop.f32.mrb[0].mxu0
    %v2631 = vadd.f32 0.0, %v2630
    %v2632 = vpop.f32.mrb[0].mxu0
    %v2633 = vadd.f32 0.0, %v2632
    %v2634 = vpop.f32.mrb[0].mxu0
    %v2635 = vadd.f32 0.0, %v2634
    %v2636 = vpop.f32.mrb[0].mxu0
    %v2637 = vadd.f32 0.0, %v2636
    %2638 = vmatprep.mubr.bf16.mxu0 0
    %2639 = vmatmul.mubr.bf16.gmra.mrb[0].mxu0 %v2428
    %v2640 = vpop.f32.mrb[0].mxu0
    %v2641 = vadd.f32 0.0, %v2640
    %v2642 = vpop.f32.mrb[0].mxu0
    %v2643 = vadd.f32 0.0, %v2642
    %v2644 = vpop.f32.mrb[0].mxu0
    %v2645 = vadd.f32 0.0, %v2644
    %v2646 = vpop.f32.mrb[0].mxu0
    %v2647 = vadd.f32 0.0, %v2646
    %2648 = vdwg.mxu0
    %2649 = vmatprep.subr.bf16.mxu0 0
    %2650 = vmatpush1.bf16.msra.mxu0 %v1995
    %2651 = vmatprep.subr.bf16.mxu0 0
    %2652 = vmatpush1.bf16.msra.mxu0 0
    %2653 = vmatprep.subr.bf16.mxu0 0
    %2654 = vmatpush1.bf16.msra.mxu0 0
    %2655 = vmatprep.subr.bf16.mxu0 0
    %2656 = vmatpush1.bf16.msra.mxu0 0
    %2657 = vmatprep.subr.bf16.mxu0 0
    %2658 = vmatpush1.bf16.msra.mxu0 0
    %2659 = vmatprep.subr.bf16.mxu0 0
    %2660 = vmatpush1.bf16.msra.mxu0 0
    %2661 = vmatprep.subr.bf16.mxu0 0
    %2662 = vmatpush1.bf16.msra.mxu0 0
    %2663 = vmatprep.subr.bf16.mxu0 0
    %2664 = vmatpush1.bf16.msra.mxu0 0
    %2665 = vmatprep.subr.bf16.mxu0 0
    %2666 = vmatpush1.bf16.msra.mxu0 0
    %2667 = vmatprep.subr.bf16.mxu0 0
    %2668 = vmatpush1.bf16.msra.mxu0 0
    %2669 = vmatprep.subr.bf16.mxu0 0
    %2670 = vmatpush1.bf16.msra.mxu0 0
    %2671 = vmatprep.subr.bf16.mxu0 0
    %2672 = vmatpush1.bf16.msra.mxu0 0
    %2673 = vmatprep.subr.bf16.mxu0 0
    %2674 = vmatpush1.bf16.msra.mxu0 0
    %2675 = vmatprep.subr.bf16.mxu0 0
    %2676 = vmatpush1.bf16.msra.mxu0 0
    %2677 = vmatprep.subr.bf16.mxu0 0
    %2678 = vmatpush1.bf16.msra.mxu0 0
    %2679 = vmatprep.subr.bf16.mxu0 0
    %2680 = vmatpush1.bf16.msra.mxu0 0
    %2681 = vmatprep.mubr.bf16.mxu0 0
    %2682 = vmatmul.mubr.bf16.gmra.mrb[0].mxu0 %v2419
    %v2683 = vpop.f32.mrb[0].mxu0
    %v2684 = vadd.f32 0.0, %v2683
    %v2685 = vpop.f32.mrb[0].mxu0
    %v2686 = vpop.f32.mrb[0].mxu0
    %v2687 = vadd.f32 0.0, %v2686
    %v2688 = vpop.f32.mrb[0].mxu0
    %2689 = vmatprep.mubr.bf16.mxu0 0
    %2690 = vmatmul.mubr.bf16.gmra.mrb[0].mxu0 %v2422
    %v2691 = vpop.f32.mrb[0].mxu0
    %v2692 = vadd.f32 0.0, %v2691
    %v2693 = vpop.f32.mrb[0].mxu0
    %v2694 = vpop.f32.mrb[0].mxu0
    %v2695 = vadd.f32 0.0, %v2694
    %v2696 = vpop.f32.mrb[0].mxu0
    %2697 = vmatprep.mubr.bf16.mxu0 0
    %2698 = vmatmul.mubr.bf16.gmra.mrb[0].mxu0 %v2425
    %v2699 = vpop.f32.mrb[0].mxu0
    %v2700 = vadd.f32 0.0, %v2699
    %v2701 = vpop.f32.mrb[0].mxu0
    %v2702 = vpop.f32.mrb[0].mxu0
    %v2703 = vadd.f32 0.0, %v2702
    %v2704 = vpop.f32.mrb[0].mxu0
    %2705 = vmatprep.mubr.bf16.mxu0 0
    %2706 = vmatmul.mubr.bf16.gmra.mrb[0].mxu0 %v2428
    %v2707 = vpop.f32.mrb[0].mxu0
    %v2708 = vadd.f32 0.0, %v2707
    %v2709 = vpop.f32.mrb[0].mxu0
    %v2710 = vpop.f32.mrb[0].mxu0
    %v2711 = vadd.f32 0.0, %v2710
    %v2712 = vpop.f32.mrb[0].mxu0
    %2713 = vdwg.mxu0
    %v2714 = vmul.f32 %v2465, %v1479
    %v2715 = vmul.f32 %v2467, %v1481
    %v2716 = vmul.f32 %v2538, %v1522
    %v2717 = vmul.f32 %v2540, %v1524
    %v2718 = vmul.f32 %v2611, %v1565
    %v2719 = vmul.f32 %v2613, %v1567
    %v2720 = vmul.f32 %v2684, %v1608
    %v2721 = vmul.f32 %v2469, %v1483
    %v2722 = vmul.f32 %v2471, %v1485
    %v2723 = vmul.f32 %v2542, %v1526
    %v2724 = vmul.f32 %v2544, %v1528
    %v2725 = vmul.f32 %v2615, %v1569
    %v2726 = vmul.f32 %v2617, %v1571
    %v2727 = vmul.f32 %v2687, %v1612
    %v2728 = vadd.f32 %v2495, %v2714
    %v2729 = vadd.f32 %v2497, %v2715
    %v2730 = vadd.f32 %v2568, %v2716
    %v2731 = vadd.f32 %v2570, %v2717
    %v2732 = vadd.f32 %v2641, %v2718
    %v2733 = vadd.f32 %v2643, %v2719
    %v2734 = vadd.f32 %v2708, %v2720
    %v2735 = vadd.f32 %v2499, %v2721
    %v2736 = vadd.f32 %v2501, %v2722
    %v2737 = vadd.f32 %v2572, %v2723
    %v2738 = vadd.f32 %v2574, %v2724
    %v2739 = vadd.f32 %v2645, %v2725
    %v2740 = vadd.f32 %v2647, %v2726
    %v2741 = vadd.f32 %v2711, %v2727
    %v2742 = vmul.f32 %v2475, %v1610
    %v2743 = vmul.f32 %v2477, %v1651
    %v2744 = vmul.f32 %v2548, %v1653
    %v2745 = vmul.f32 %v2550, %v1694
    %v2746 = vmul.f32 %v2621, %v1696
    %v2747 = vmul.f32 %v2623, %v1737
    %v2748 = vmul.f32 %v2692, %v1739
    %v2749 = vmul.f32 %v2479, %v1614
    %v2750 = vmul.f32 %v2481, %v1655
    %v2751 = vmul.f32 %v2552, %v1657
    %v2752 = vmul.f32 %v2554, %v1698
    %v2753 = vmul.f32 %v2625, %v1700
    %v2754 = vmul.f32 %v2627, %v1741
    %v2755 = vmul.f32 %v2695, %v1743
    %v2756 = vadd.f32 %v2728, %v2742
    %v2757 = vadd.f32 %v2729, %v2743
    %v2758 = vadd.f32 %v2730, %v2744
    %v2759 = vadd.f32 %v2731, %v2745
    %v2760 = vadd.f32 %v2732, %v2746
    %v2761 = vadd.f32 %v2733, %v2747
    %v2762 = vadd.f32 %v2734, %v2748
    %v2763 = vadd.f32 %v2735, %v2749
    %v2764 = vadd.f32 %v2736, %v2750
    %v2765 = vadd.f32 %v2737, %v2751
    %v2766 = vadd.f32 %v2738, %v2752
    %v2767 = vadd.f32 %v2739, %v2753
    %v2768 = vadd.f32 %v2740, %v2754
    %v2769 = vadd.f32 %v2741, %v2755
    %v2770 = vmul.f32 %v2485, %v1780
    %v2771 = vmul.f32 %v2487, %v1782
    %v2772 = vmul.f32 %v2558, %v1823
    %v2773 = vmul.f32 %v2560, %v1825
    %v2774 = vmul.f32 %v2631, %v1866
    %v2775 = vmul.f32 %v2633, %v1868
    %v2776 = vmul.f32 %v2700, %v1909
    %v2777 = vmul.f32 %v2489, %v1784
    %v2778 = vmul.f32 %v2491, %v1786
    %v2779 = vmul.f32 %v2562, %v1827
    %v2780 = vmul.f32 %v2564, %v1829
    %v2781 = vmul.f32 %v2635, %v1870
    %v2782 = vmul.f32 %v2637, %v1872
    %v2783 = vmul.f32 %v2703, %v1912
    %v2784 = vadd.f32 %v2756, %v2770
    %v2785 = vadd.f32 %v2757, %v2771
    %v2786 = vadd.f32 %v2758, %v2772
    %v2787 = vadd.f32 %v2759, %v2773
    %v2788 = vadd.f32 %v2760, %v2774
    %v2789 = vadd.f32 %v2761, %v2775
    %v2790 = vadd.f32 %v2762, %v2776
    %v2791 = vadd.f32 %v2763, %v2777
    %v2792 = vadd.f32 %v2764, %v2778
    %v2793 = vadd.f32 %v2765, %v2779
    %v2794 = vadd.f32 %v2766, %v2780
    %v2795 = vadd.f32 %v2767, %v2781
    %v2796 = vadd.f32 %v2768, %v2782
    %v2797 = vadd.f32 %v2769, %v2783
    %2798 = vst [vmem:[#allocation5 + $0x38] sm:$0xff] %v2784
    %2799 = vst [vmem:[#allocation5 + $0x40] sm:$0xff] %v2785
    %2800 = vst [vmem:[#allocation5 + $0x48] sm:$0xff] %v2786
    %2801 = vst [vmem:[#allocation5 + $0x50] sm:$0xff] %v2787
    %2802 = vst [vmem:[#allocation5 + $0x58] sm:$0xff] %v2788
    %2803 = vst [vmem:[#allocation5 + $0x60] sm:$0xff] %v2789
    %2804 = vst [vmem:[#allocation5 + $0x68] sm:$0xff] %v2790
    %2805 = vst [vmem:[#allocation5 + $0xe0] sm:$0xff] %v2791
    %2806 = vst [vmem:[#allocation5 + $0xe8] sm:$0xff] %v2792
    %2807 = vst [vmem:[#allocation5 + $0xf0] sm:$0xff] %v2793
    %2808 = vst [vmem:[#allocation5 + $0xf8] sm:$0xff] %v2794
    %2809 = vst [vmem:[#allocation5 + $0x100] sm:$0xff] %v2795
    %2810 = vst [vmem:[#allocation5 + $0x108] sm:$0xff] %v2796
    %2811 = vst [vmem:[#allocation5 + $0x110] sm:$0xff] %v2797
    %v2820 = vunpack.c.l.b16 %v1931
    %v2821 = vunpack.c.l.b16 %v1932
    %v2822 = vunpack.c.l.b16 %v1933
    %v2823 = vunpack.c.l.b16 %v1934
    %v2824 = vunpack.c.l.b16 %v1935
    %v2825 = vunpack.c.l.b16 %v1936
    %v2826 = vunpack.c.l.b16 %v1937
    %v2827 = vunpack.c.l.b16 %v1938
    %v2828 = vpack.c.b16 %v2821, %v2820
    %v2829 = vpack.c.b16 %v2823, %v2822
    %v2830 = vpack.c.b16 %v2825, %v2824
    %v2831 = vpack.c.b16 %v2827, %v2826
    %v2833 = vsel %vm2003, %v2828, 0
    %v2836 = vsel %vm2003, %v2829, 0
    %v2839 = vsel %vm2003, %v2830, 0
    %v2842 = vsel %vm2003, %v2831, 0
    %2844 = vmatprep.subr.bf16.mxu0 %v1990
    %2845 = vmatpush1.bf16.msra.mxu0 %v1989
    %2846 = vmatprep.subr.bf16.mxu0 0
    %2847 = vmatpush1.bf16.msra.mxu0 0
    %2848 = vmatprep.subr.bf16.mxu0 0
    %2849 = vmatpush1.bf16.msra.mxu0 0
    %2850 = vmatprep.subr.bf16.mxu0 0
    %2851 = vmatpush1.bf16.msra.mxu0 0
    %2852 = vmatprep.subr.bf16.mxu0 0
    %2853 = vmatpush1.bf16.msra.mxu0 0
    %2854 = vmatprep.subr.bf16.mxu0 0
    %2855 = vmatpush1.bf16.msra.mxu0 0
    %2856 = vmatprep.subr.bf16.mxu0 0
    %2857 = vmatpush1.bf16.msra.mxu0 0
    %2858 = vmatprep.subr.bf16.mxu0 0
    %2859 = vmatpush1.bf16.msra.mxu0 0
    %2860 = vmatprep.subr.bf16.mxu0 0
    %2861 = vmatpush1.bf16.msra.mxu0 0
    %2862 = vmatprep.subr.bf16.mxu0 0
    %2863 = vmatpush1.bf16.msra.mxu0 0
    %2864 = vmatprep.subr.bf16.mxu0 0
    %2865 = vmatpush1.bf16.msra.mxu0 0
    %2866 = vmatprep.subr.bf16.mxu0 0
    %2867 = vmatpush1.bf16.msra.mxu0 0
    %2868 = vmatprep.subr.bf16.mxu0 0
    %2869 = vmatpush1.bf16.msra.mxu0 0
    %2870 = vmatprep.subr.bf16.mxu0 0
    %2871 = vmatpush1.bf16.msra.mxu0 0
    %2872 = vmatprep.subr.bf16.mxu0 0
    %2873 = vmatpush1.bf16.msra.mxu0 0
    %2874 = vmatprep.subr.bf16.mxu0 0
    %2875 = vmatpush1.bf16.msra.mxu0 0
    %2876 = vmatprep.mubr.bf16.mxu0 0
    %2877 = vmatmul.mubr.bf16.gmra.mrb[0].mxu0 %v2833
    %v2878 = vpop.f32.mrb[0].mxu0
    %v2879 = vadd.f32 0.0, %v2878
    %v2880 = vpop.f32.mrb[0].mxu0
    %v2881 = vadd.f32 0.0, %v2880
    %v2882 = vpop.f32.mrb[0].mxu0
    %v2883 = vadd.f32 0.0, %v2882
    %v2884 = vpop.f32.mrb[0].mxu0
    %v2885 = vadd.f32 0.0, %v2884
    %2886 = vmatprep.mubr.bf16.mxu0 0
    %2887 = vmatmul.mubr.bf16.gmra.mrb[0].mxu0 %v2836
    %v2888 = vpop.f32.mrb[0].mxu0
    %v2889 = vadd.f32 0.0, %v2888
    %v2890 = vpop.f32.mrb[0].mxu0
    %v2891 = vadd.f32 0.0, %v2890
    %v2892 = vpop.f32.mrb[0].mxu0
    %v2893 = vadd.f32 0.0, %v2892
    %v2894 = vpop.f32.mrb[0].mxu0
    %v2895 = vadd.f32 0.0, %v2894
    %2896 = vmatprep.mubr.bf16.mxu0 0
    %2897 = vmatmul.mubr.bf16.gmra.mrb[0].mxu0 %v2839
    %v2898 = vpop.f32.mrb[0].mxu0
    %v2899 = vadd.f32 0.0, %v2898
    %v2900 = vpop.f32.mrb[0].mxu0
    %v2901 = vadd.f32 0.0, %v2900
    %v2902 = vpop.f32.mrb[0].mxu0
    %v2903 = vadd.f32 0.0, %v2902
    %v2904 = vpop.f32.mrb[0].mxu0
    %v2905 = vadd.f32 0.0, %v2904
    %2906 = vmatprep.mubr.bf16.mxu0 0
    %2907 = vmatmul.mubr.bf16.gmra.mrb[0].mxu0 %v2842
    %v2908 = vpop.f32.mrb[0].mxu0
    %v2909 = vadd.f32 0.0, %v2908
    %v2910 = vpop.f32.mrb[0].mxu0
    %v2911 = vadd.f32 0.0, %v2910
    %v2912 = vpop.f32.mrb[0].mxu0
    %v2913 = vadd.f32 0.0, %v2912
    %v2914 = vpop.f32.mrb[0].mxu0
    %v2915 = vadd.f32 0.0, %v2914
    %2916 = vdwg.mxu0
    %2917 = vmatprep.subr.bf16.mxu0 %v1992
    %2918 = vmatpush1.bf16.msra.mxu0 %v1991
    %2919 = vmatprep.subr.bf16.mxu0 0
    %2920 = vmatpush1.bf16.msra.mxu0 0
    %2921 = vmatprep.subr.bf16.mxu0 0
    %2922 = vmatpush1.bf16.msra.mxu0 0
    %2923 = vmatprep.subr.bf16.mxu0 0
    %2924 = vmatpush1.bf16.msra.mxu0 0
    %2925 = vmatprep.subr.bf16.mxu0 0
    %2926 = vmatpush1.bf16.msra.mxu0 0
    %2927 = vmatprep.subr.bf16.mxu0 0
    %2928 = vmatpush1.bf16.msra.mxu0 0
    %2929 = vmatprep.subr.bf16.mxu0 0
    %2930 = vmatpush1.bf16.msra.mxu0 0
    %2931 = vmatprep.subr.bf16.mxu0 0
    %2932 = vmatpush1.bf16.msra.mxu0 0
    %2933 = vmatprep.subr.bf16.mxu0 0
    %2934 = vmatpush1.bf16.msra.mxu0 0
    %2935 = vmatprep.subr.bf16.mxu0 0
    %2936 = vmatpush1.bf16.msra.mxu0 0
    %2937 = vmatprep.subr.bf16.mxu0 0
    %2938 = vmatpush1.bf16.msra.mxu0 0
    %2939 = vmatprep.subr.bf16.mxu0 0
    %2940 = vmatpush1.bf16.msra.mxu0 0
    %2941 = vmatprep.subr.bf16.mxu0 0
    %2942 = vmatpush1.bf16.msra.mxu0 0
    %2943 = vmatprep.subr.bf16.mxu0 0
    %2944 = vmatpush1.bf16.msra.mxu0 0
    %2945 = vmatprep.subr.bf16.mxu0 0
    %2946 = vmatpush1.bf16.msra.mxu0 0
    %2947 = vmatprep.subr.bf16.mxu0 0
    %2948 = vmatpush1.bf16.msra.mxu0 0
    %2949 = vmatprep.mubr.bf16.mxu0 0
    %2950 = vmatmul.mubr.bf16.gmra.mrb[0].mxu0 %v2833
    %v2951 = vpop.f32.mrb[0].mxu0
    %v2952 = vadd.f32 0.0, %v2951
    %v2953 = vpop.f32.mrb[0].mxu0
    %v2954 = vadd.f32 0.0, %v2953
    %v2955 = vpop.f32.mrb[0].mxu0
    %v2956 = vadd.f32 0.0, %v2955
    %v2957 = vpop.f32.mrb[0].mxu0
    %v2958 = vadd.f32 0.0, %v2957
    %2959 = vmatprep.mubr.bf16.mxu0 0
    %2960 = vmatmul.mubr.bf16.gmra.mrb[0].mxu0 %v2836
    %v2961 = vpop.f32.mrb[0].mxu0
    %v2962 = vadd.f32 0.0, %v2961
    %v2963 = vpop.f32.mrb[0].mxu0
    %v2964 = vadd.f32 0.0, %v2963
    %v2965 = vpop.f32.mrb[0].mxu0
    %v2966 = vadd.f32 0.0, %v2965
    %v2967 = vpop.f32.mrb[0].mxu0
    %v2968 = vadd.f32 0.0, %v2967
    %2969 = vmatprep.mubr.bf16.mxu0 0
    %2970 = vmatmul.mubr.bf16.gmra.mrb[0].mxu0 %v2839
    %v2971 = vpop.f32.mrb[0].mxu0
    %v2972 = vadd.f32 0.0, %v2971
    %v2973 = vpop.f32.mrb[0].mxu0
    %v2974 = vadd.f32 0.0, %v2973
    %v2975 = vpop.f32.mrb[0].mxu0
    %v2976 = vadd.f32 0.0, %v2975
    %v2977 = vpop.f32.mrb[0].mxu0
    %v2978 = vadd.f32 0.0, %v2977
    %2979 = vmatprep.mubr.bf16.mxu0 0
    %2980 = vmatmul.mubr.bf16.gmra.mrb[0].mxu0 %v2842
    %v2981 = vpop.f32.mrb[0].mxu0
    %v2982 = vadd.f32 0.0, %v2981
    %v2983 = vpop.f32.mrb[0].mxu0
    %v2984 = vadd.f32 0.0, %v2983
    %v2985 = vpop.f32.mrb[0].mxu0
    %v2986 = vadd.f32 0.0, %v2985
    %v2987 = vpop.f32.mrb[0].mxu0
    %v2988 = vadd.f32 0.0, %v2987
    %2989 = vdwg.mxu0
    %2990 = vmatprep.subr.bf16.mxu0 %v1994
    %2991 = vmatpush1.bf16.msra.mxu0 %v1993
    %2992 = vmatprep.subr.bf16.mxu0 0
    %2993 = vmatpush1.bf16.msra.mxu0 0
    %2994 = vmatprep.subr.bf16.mxu0 0
    %2995 = vmatpush1.bf16.msra.mxu0 0
    %2996 = vmatprep.subr.bf16.mxu0 0
    %2997 = vmatpush1.bf16.msra.mxu0 0
    %2998 = vmatprep.subr.bf16.mxu0 0
    %2999 = vmatpush1.bf16.msra.mxu0 0
    %3000 = vmatprep.subr.bf16.mxu0 0
    %3001 = vmatpush1.bf16.msra.mxu0 0
    %3002 = vmatprep.subr.bf16.mxu0 0
    %3003 = vmatpush1.bf16.msra.mxu0 0
    %3004 = vmatprep.subr.bf16.mxu0 0
    %3005 = vmatpush1.bf16.msra.mxu0 0
    %3006 = vmatprep.subr.bf16.mxu0 0
    %3007 = vmatpush1.bf16.msra.mxu0 0
    %3008 = vmatprep.subr.bf16.mxu0 0
    %3009 = vmatpush1.bf16.msra.mxu0 0
    %3010 = vmatprep.subr.bf16.mxu0 0
    %3011 = vmatpush1.bf16.msra.mxu0 0
    %3012 = vmatprep.subr.bf16.mxu0 0
    %3013 = vmatpush1.bf16.msra.mxu0 0
    %3014 = vmatprep.subr.bf16.mxu0 0
    %3015 = vmatpush1.bf16.msra.mxu0 0
    %3016 = vmatprep.subr.bf16.mxu0 0
    %3017 = vmatpush1.bf16.msra.mxu0 0
    %3018 = vmatprep.subr.bf16.mxu0 0
    %3019 = vmatpush1.bf16.msra.mxu0 0
    %3020 = vmatprep.subr.bf16.mxu0 0
    %3021 = vmatpush1.bf16.msra.mxu0 0
    %3022 = vmatprep.mubr.bf16.mxu0 0
    %3023 = vmatmul.mubr.bf16.gmra.mrb[0].mxu0 %v2833
    %v3024 = vpop.f32.mrb[0].mxu0
    %v3025 = vadd.f32 0.0, %v3024
    %v3026 = vpop.f32.mrb[0].mxu0
    %v3027 = vadd.f32 0.0, %v3026
    %v3028 = vpop.f32.mrb[0].mxu0
    %v3029 = vadd.f32 0.0, %v3028
    %v3030 = vpop.f32.mrb[0].mxu0
    %v3031 = vadd.f32 0.0, %v3030
    %3032 = vmatprep.mubr.bf16.mxu0 0
    %3033 = vmatmul.mubr.bf16.gmra.mrb[0].mxu0 %v2836
    %v3034 = vpop.f32.mrb[0].mxu0
    %v3035 = vadd.f32 0.0, %v3034
    %v3036 = vpop.f32.mrb[0].mxu0
    %v3037 = vadd.f32 0.0, %v3036
    %v3038 = vpop.f32.mrb[0].mxu0
    %v3039 = vadd.f32 0.0, %v3038
    %v3040 = vpop.f32.mrb[0].mxu0
    %v3041 = vadd.f32 0.0, %v3040
    %3042 = vmatprep.mubr.bf16.mxu0 0
    %3043 = vmatmul.mubr.bf16.gmra.mrb[0].mxu0 %v2839
    %v3044 = vpop.f32.mrb[0].mxu0
    %v3045 = vadd.f32 0.0, %v3044
    %v3046 = vpop.f32.mrb[0].mxu0
    %v3047 = vadd.f32 0.0, %v3046
    %v3048 = vpop.f32.mrb[0].mxu0
    %v3049 = vadd.f32 0.0, %v3048
    %v3050 = vpop.f32.mrb[0].mxu0
    %v3051 = vadd.f32 0.0, %v3050
    %3052 = vmatprep.mubr.bf16.mxu0 0
    %3053 = vmatmul.mubr.bf16.gmra.mrb[0].mxu0 %v2842
    %v3054 = vpop.f32.mrb[0].mxu0
    %v3055 = vadd.f32 0.0, %v3054
    %v3056 = vpop.f32.mrb[0].mxu0
    %v3057 = vadd.f32 0.0, %v3056
    %v3058 = vpop.f32.mrb[0].mxu0
    %v3059 = vadd.f32 0.0, %v3058
    %v3060 = vpop.f32.mrb[0].mxu0
    %v3061 = vadd.f32 0.0, %v3060
    %3062 = vdwg.mxu0
    %3063 = vmatprep.subr.bf16.mxu0 0
    %3064 = vmatpush1.bf16.msra.mxu0 %v1995
    %3065 = vmatprep.subr.bf16.mxu0 0
    %3066 = vmatpush1.bf16.msra.mxu0 0
    %3067 = vmatprep.subr.bf16.mxu0 0
    %3068 = vmatpush1.bf16.msra.mxu0 0
    %3069 = vmatprep.subr.bf16.mxu0 0
    %3070 = vmatpush1.bf16.msra.mxu0 0
    %3071 = vmatprep.subr.bf16.mxu0 0
    %3072 = vmatpush1.bf16.msra.mxu0 0
    %3073 = vmatprep.subr.bf16.mxu0 0
    %3074 = vmatpush1.bf16.msra.mxu0 0
    %3075 = vmatprep.subr.bf16.mxu0 0
    %3076 = vmatpush1.bf16.msra.mxu0 0
    %3077 = vmatprep.subr.bf16.mxu0 0
    %3078 = vmatpush1.bf16.msra.mxu0 0
    %3079 = vmatprep.subr.bf16.mxu0 0
    %3080 = vmatpush1.bf16.msra.mxu0 0
    %3081 = vmatprep.subr.bf16.mxu0 0
    %3082 = vmatpush1.bf16.msra.mxu0 0
    %3083 = vmatprep.subr.bf16.mxu0 0
    %3084 = vmatpush1.bf16.msra.mxu0 0
    %3085 = vmatprep.subr.bf16.mxu0 0
    %3086 = vmatpush1.bf16.msra.mxu0 0
    %3087 = vmatprep.subr.bf16.mxu0 0
    %3088 = vmatpush1.bf16.msra.mxu0 0
    %3089 = vmatprep.subr.bf16.mxu0 0
    %3090 = vmatpush1.bf16.msra.mxu0 0
    %3091 = vmatprep.subr.bf16.mxu0 0
    %3092 = vmatpush1.bf16.msra.mxu0 0
    %3093 = vmatprep.subr.bf16.mxu0 0
    %3094 = vmatpush1.bf16.msra.mxu0 0
    %3095 = vmatprep.mubr.bf16.mxu0 0
    %3096 = vmatmul.mubr.bf16.gmra.mrb[0].mxu0 %v2833
    %v3097 = vpop.f32.mrb[0].mxu0
    %v3098 = vadd.f32 0.0, %v3097
    %v3099 = vpop.f32.mrb[0].mxu0
    %v3100 = vpop.f32.mrb[0].mxu0
    %v3101 = vadd.f32 0.0, %v3100
    %v3102 = vpop.f32.mrb[0].mxu0
    %3103 = vmatprep.mubr.bf16.mxu0 0
    %3104 = vmatmul.mubr.bf16.gmra.mrb[0].mxu0 %v2836
    %v3105 = vpop.f32.mrb[0].mxu0
    %v3106 = vadd.f32 0.0, %v3105
    %v3107 = vpop.f32.mrb[0].mxu0
    %v3108 = vpop.f32.mrb[0].mxu0
    %v3109 = vadd.f32 0.0, %v3108
    %v3110 = vpop.f32.mrb[0].mxu0
    %3111 = vmatprep.mubr.bf16.mxu0 0
    %3112 = vmatmul.mubr.bf16.gmra.mrb[0].mxu0 %v2839
    %v3113 = vpop.f32.mrb[0].mxu0
    %v3114 = vadd.f32 0.0, %v3113
    %v3115 = vpop.f32.mrb[0].mxu0
    %v3116 = vpop.f32.mrb[0].mxu0
    %v3117 = vadd.f32 0.0, %v3116
    %v3118 = vpop.f32.mrb[0].mxu0
    %3119 = vmatprep.mubr.bf16.mxu0 0
    %3120 = vmatmul.mubr.bf16.gmra.mrb[0].mxu0 %v2842
    %v3121 = vpop.f32.mrb[0].mxu0
    %v3122 = vadd.f32 0.0, %v3121
    %v3123 = vpop.f32.mrb[0].mxu0
    %v3124 = vpop.f32.mrb[0].mxu0
    %v3125 = vadd.f32 0.0, %v3124
    %v3126 = vpop.f32.mrb[0].mxu0
    %3127 = vdwg.mxu0
    %v3128 = vmul.f32 %v2879, %v1479
    %v3129 = vmul.f32 %v2881, %v1481
    %v3130 = vmul.f32 %v2952, %v1522
    %v3131 = vmul.f32 %v2954, %v1524
    %v3132 = vmul.f32 %v3025, %v1565
    %v3133 = vmul.f32 %v3027, %v1567
    %v3134 = vmul.f32 %v3098, %v1608
    %v3135 = vmul.f32 %v2883, %v1483
    %v3136 = vmul.f32 %v2885, %v1485
    %v3137 = vmul.f32 %v2956, %v1526
    %v3138 = vmul.f32 %v2958, %v1528
    %v3139 = vmul.f32 %v3029, %v1569
    %v3140 = vmul.f32 %v3031, %v1571
    %v3141 = vmul.f32 %v3101, %v1612
    %v3142 = vadd.f32 %v2909, %v3128
    %v3143 = vadd.f32 %v2911, %v3129
    %v3144 = vadd.f32 %v2982, %v3130
    %v3145 = vadd.f32 %v2984, %v3131
    %v3146 = vadd.f32 %v3055, %v3132
    %v3147 = vadd.f32 %v3057, %v3133
    %v3148 = vadd.f32 %v3122, %v3134
    %v3149 = vadd.f32 %v2913, %v3135
    %v3150 = vadd.f32 %v2915, %v3136
    %v3151 = vadd.f32 %v2986, %v3137
    %v3152 = vadd.f32 %v2988, %v3138
    %v3153 = vadd.f32 %v3059, %v3139
    %v3154 = vadd.f32 %v3061, %v3140
    %v3155 = vadd.f32 %v3125, %v3141
    %v3156 = vmul.f32 %v2889, %v1610
    %v3157 = vmul.f32 %v2891, %v1651
    %v3158 = vmul.f32 %v2962, %v1653
    %v3159 = vmul.f32 %v2964, %v1694
    %v3160 = vmul.f32 %v3035, %v1696
    %v3161 = vmul.f32 %v3037, %v1737
    %v3162 = vmul.f32 %v3106, %v1739
    %v3163 = vmul.f32 %v2893, %v1614
    %v3164 = vmul.f32 %v2895, %v1655
    %v3165 = vmul.f32 %v2966, %v1657
    %v3166 = vmul.f32 %v2968, %v1698
    %v3167 = vmul.f32 %v3039, %v1700
    %v3168 = vmul.f32 %v3041, %v1741
    %v3169 = vmul.f32 %v3109, %v1743
    %v3170 = vadd.f32 %v3142, %v3156
    %v3171 = vadd.f32 %v3143, %v3157
    %v3172 = vadd.f32 %v3144, %v3158
    %v3173 = vadd.f32 %v3145, %v3159
    %v3174 = vadd.f32 %v3146, %v3160
    %v3175 = vadd.f32 %v3147, %v3161
    %v3176 = vadd.f32 %v3148, %v3162
    %v3177 = vadd.f32 %v3149, %v3163
    %v3178 = vadd.f32 %v3150, %v3164
    %v3179 = vadd.f32 %v3151, %v3165
    %v3180 = vadd.f32 %v3152, %v3166
    %v3181 = vadd.f32 %v3153, %v3167
    %v3182 = vadd.f32 %v3154, %v3168
    %v3183 = vadd.f32 %v3155, %v3169
    %v3184 = vmul.f32 %v2899, %v1780
    %v3185 = vmul.f32 %v2901, %v1782
    %v3186 = vmul.f32 %v2972, %v1823
    %v3187 = vmul.f32 %v2974, %v1825
    %v3188 = vmul.f32 %v3045, %v1866
    %v3189 = vmul.f32 %v3047, %v1868
    %v3190 = vmul.f32 %v3114, %v1909
    %v3191 = vmul.f32 %v2903, %v1784
    %v3192 = vmul.f32 %v2905, %v1786
    %v3193 = vmul.f32 %v2976, %v1827
    %v3194 = vmul.f32 %v2978, %v1829
    %v3195 = vmul.f32 %v3049, %v1870
    %v3196 = vmul.f32 %v3051, %v1872
    %v3197 = vmul.f32 %v3117, %v1912
    %v3198 = vadd.f32 %v3170, %v3184
    %v3199 = vadd.f32 %v3171, %v3185
    %v3200 = vadd.f32 %v3172, %v3186
    %v3201 = vadd.f32 %v3173, %v3187
    %v3202 = vadd.f32 %v3174, %v3188
    %v3203 = vadd.f32 %v3175, %v3189
    %v3204 = vadd.f32 %v3176, %v3190
    %v3205 = vadd.f32 %v3177, %v3191
    %v3206 = vadd.f32 %v3178, %v3192
    %v3207 = vadd.f32 %v3179, %v3193
    %v3208 = vadd.f32 %v3180, %v3194
    %v3209 = vadd.f32 %v3181, %v3195
    %v3210 = vadd.f32 %v3182, %v3196
    %v3211 = vadd.f32 %v3183, %v3197
    %3212 = vst [vmem:[#allocation5 + $0x70] sm:$0xff] %v3198
    %3213 = vst [vmem:[#allocation5 + $0x78] sm:$0xff] %v3199
    %3214 = vst [vmem:[#allocation5 + $0x80] sm:$0xff] %v3200
    %3215 = vst [vmem:[#allocation5 + $0x88] sm:$0xff] %v3201
    %3216 = vst [vmem:[#allocation5 + $0x90] sm:$0xff] %v3202
    %3217 = vst [vmem:[#allocation5 + $0x98] sm:$0xff] %v3203
    %3218 = vst [vmem:[#allocation5 + $0xa0] sm:$0xff] %v3204
    %3219 = vst [vmem:[#allocation5 + $0x118] sm:$0xff] %v3205
    %3220 = vst [vmem:[#allocation5 + $0x120] sm:$0xff] %v3206
    %3221 = vst [vmem:[#allocation5 + $0x128] sm:$0xff] %v3207
    %3222 = vst [vmem:[#allocation5 + $0x130] sm:$0xff] %v3208
    %3223 = vst [vmem:[#allocation5 + $0x138] sm:$0xff] %v3209
    %3224 = vst [vmem:[#allocation5 + $0x140] sm:$0xff] %v3210
    %3225 = vst [vmem:[#allocation5 + $0x148] sm:$0xff] %v3211
    // Predicated region
    $region26: #{tpu_custom_call.1} parent=1 // pred_check
      _
    $region27: #{tpu_custom_call.1} parent=1 // pred_check_branch
      %3227 = sbr.rel (0) target = $region29
    $region28: #{tpu_custom_call.1} parent=1 // pred_region
      %s3229 = ssub.s32 5376, 5376
      %3230 = vsyncadd [#allocation4], %s3229
      %s3231 = sshll.u32 [#allocation5], 4
      %s3232 = int_to_ptr.vmem [resolvable:$true] %s3231
      %3237 = dma.vmem_to_hbm [thread:$0]  %s3232, 5376, %s5, [#allocation4], 2688, 2688, 168
    $region29: #{tpu_custom_call.1} parent=1 // pred_fallthru
      _
    // Predicated region
    $region30: #{tpu_custom_call.1} parent=1 // pred_check
      _
    $region31: #{tpu_custom_call.1} parent=1 // pred_check_branch
      %3239 = sbr.rel (0) target = $region33
    $region32: #{tpu_custom_call.1} parent=1 // pred_region
      %3240 = dma.done [#allocation4], 5376
    $region33: #{tpu_custom_call.1} parent=1 // pred_fallthru
      _
    %3241 = vsyncpa [#allocation3], 1
    %3242 = vsyncpa [#allocation4], 1

</llo_original>
